<compile_context>
chip_gen: v7x
topology: tpu7x:2x2x1
jax: 0.10.0
libtpu: 0.0.40
codegen_flags: <defaults>
</compile_context>

<pallas_src>
import functools

import jax
import jax.numpy as jnp
import numpy as np
from jax.experimental import pallas as pl
from jax.experimental.pallas import tpu as pltpu

BITS = 4
PACK = 32 // BITS          # 8 int4 values per int32 word
MAXQ = (1 << BITS) - 1     # 15


def _round_up(x, m):
    return (x + m - 1) // m * m


@functools.lru_cache(maxsize=None)
def _vmem_limit_bytes():
    # v5e/v6e have 128 MiB VMEM, v7x 64 MiB per TensorCore; leave headroom for the
    # compiler's own scratch and double-buffered DMA.
    cap = 64 * 1024 * 1024                      # conservative fallback
    try:
        cap = int(pltpu.get_tpu_info().vmem_capacity_bytes)
    except Exception:
        pass
    return max(32 * 1024 * 1024, min(cap // 2, 64 * 1024 * 1024))


# ----------------------------------------------------------------------------
# In-kernel GPTQ dequantization of ONE quantization group.
#   qw_ref : (gpt*sub, tn) int32 ref, per-group-block nibble layout:
#            within group g, nibble j of word-row r holds K-row g*gs + j*sub + r.
#   sb     : (gpt, 2, tn) bf16 array; [:,0,:] = scales, [:,1,:] = -(zeros+1)*scales.
# Returns a (group_size, tn) bf16 slab ready for the MXU.
# ----------------------------------------------------------------------------
def _dequant_group_bf16(qw_ref, sb, g, sub):
    qg = qw_ref[g * sub:(g + 1) * sub, :]                 # (sub, tn) int32
    nibs = [qg & MAXQ]                                    # nibble 0: no shift needed
    for j in range(1, PACK):
        nibs.append((qg >> (BITS * j)) & MAXQ)
    w_int = jnp.concatenate(nibs, axis=0)                 # (group_size, tn) int32
    scale = sb[g, 0:1, :]                                 # (1, tn) bf16
    bias = sb[g, 1:2, :]                                  # (1, tn) bf16
    # 1 convert + 1 mul + 1 add per element, all in bf16 (native VALU on v6e/v7x).
    return w_int.astype(jnp.bfloat16) * scale + bias


def _fused_gate_up_kernel(x_ref, gqw_ref, gsb_ref, uqw_ref, usb_ref,
                          c_ref, acc_g, acc_u, *, gpt, sub, gs):
    k = pl.program_id(2)

    @pl.when(k == 0)
    def _():
        acc_g[...] = jnp.zeros_like(acc_g)
        acc_u[...] = jnp.zeros_like(acc_u)

    gsb = gsb_ref[...]                                    # (gpt, 2, tn) bf16 (small)
    usb = usb_ref[...]
    for g in range(gpt):                                  # per-group dequant -> dot
        x_g = x_ref[:, g * gs:(g + 1) * gs]               # (tm, gs) bf16
        wg = _dequant_group_bf16(gqw_ref, gsb, g, sub)
        acc_g[...] += jnp.dot(x_g, wg, preferred_element_type=jnp.float32)
        wu = _dequant_group_bf16(uqw_ref, usb, g, sub)
        acc_u[...] += jnp.dot(x_g, wu, preferred_element_type=jnp.float32)

    @pl.when(k == pl.num_programs(2) - 1)
    def _():
        gate = acc_g[...]
        c_ref[...] = (gate * jax.nn.sigmoid(gate) * acc_u[...]).astype(c_ref.dtype)


def _quant_matmul_kernel(x_ref, qw_ref, sb_ref, o_ref, acc, *, gpt, sub, gs):
    k = pl.program_id(2)

    @pl.when(k == 0)
    def _():
        acc[...] = jnp.zeros_like(acc)

    sb = sb_ref[...]
    for g in range(gpt):
        x_g = x_ref[:, g * gs:(g + 1) * gs]
        w = _dequant_group_bf16(qw_ref, sb, g, sub)
        acc[...] += jnp.dot(x_g, w, preferred_element_type=jnp.float32)

    @pl.when(k == pl.num_programs(2) - 1)
    def _():
        o_ref[...] = acc[...].astype(o_ref.dtype)


# ----------------------------------------------------------------------------
# Tiling heuristics (VMEM-safe on v5e/v6e/v7x: <= ~12 MiB live per grid step)
# ----------------------------------------------------------------------------
def _pick_tm(M):
    if M >= 256:
        return 256
    if M >= 128:
        return 128
    return _round_up(M, 8)


def _pick_tn(N, parallel_rows):
    assert N % 128 == 0, (
        f"output feature dim {N} must be a multiple of 128 (TODO(synk): pad-N path)")
    tn = 128
    for t in (2048, 1024, 512, 256, 128):
        if N % t == 0:
            tn = t
            break
    # Keep at least 2 parallel (i, j) blocks so both v7x TensorCores get work
    # (matters for decode-shaped calls where M/tm == 1).
    while parallel_rows * (N // tn) < 2 and tn > 128:
        tn //= 2
    return tn


def _pick_gpt(K, group_size):
    """Groups per K step: tk = gpt*group_size, capped at 1024, lane-aligned."""
    n_groups = K // group_size
    best = 1
    for g in range(1, min(16, n_groups) + 1):
        tk = g * group_size
        if n_groups % g == 0 and tk <= 1024 and (tk % 128 == 0 or tk == K):
            best = g
    return best


# ----------------------------------------------------------------------------
# pallas_call wrappers
# ----------------------------------------------------------------------------
def _gate_up_call(x2, gate, up, group_size, tm, tn, gpt):
    M, K = x2.shape
    N = gate["qweight"].shape[1]
    tk = gpt * group_size
    sub = group_size // PACK
    assert M % tm == 0 and N % tn == 0 and K % tk == 0
    grid = (M // tm, N // tn, K // tk)

    qw_spec = pl.BlockSpec((gpt * sub, tn), lambda i, j, k: (k, j))
    sb_spec = pl.BlockSpec((gpt, 2, tn), lambda i, j, k: (k, 0, j))
    kernel = functools.partial(_fused_gate_up_kernel, gpt=gpt, sub=sub, gs=group_size)

    return pl.pallas_call(
        kernel,
        out_shape=jax.ShapeDtypeStruct((M, N), jnp.bfloat16),
        grid_spec=pltpu.PrefetchScalarGridSpec(
            num_scalar_prefetch=0, grid=grid,
            in_specs=[
                pl.BlockSpec((tm, tk), lambda i, j, k: (i, k)),
                qw_spec, sb_spec,                 # gate: qweight, scale+bias
                qw_spec, sb_spec,                 # up:   qweight, scale+bias
            ],
            out_specs=pl.BlockSpec((tm, tn), lambda i, j, k: (i, j)),
            scratch_shapes=[pltpu.VMEM((tm, tn), jnp.float32),
                            pltpu.VMEM((tm, tn), jnp.float32)]),
        compiler_params=pltpu.CompilerParams(
            dimension_semantics=("parallel", "parallel", "arbitrary"),
            vmem_limit_bytes=_vmem_limit_bytes()),
    )(x2, gate["qweight"], gate["scale_bias"], up["qweight"], up["scale_bias"])


def _quant_matmul_call(x2, proj, group_size, tm, tn, gpt, out_dtype):
    M, K = x2.shape
    N = proj["qweight"].shape[1]
    tk = gpt * group_size
    sub = group_size // PACK
    assert M % tm == 0 and N % tn == 0 and K % tk == 0
    grid = (M // tm, N // tn, K // tk)

    kernel = functools.partial(_quant_matmul_kernel, gpt=gpt, sub=sub, gs=group_size)

    return pl.pallas_call(
        kernel,
        out_shape=jax.ShapeDtypeStruct((M, N), out_dtype),
        grid_spec=pltpu.PrefetchScalarGridSpec(
            num_scalar_prefetch=0, grid=grid,
            in_specs=[
                pl.BlockSpec((tm, tk), lambda i, j, k: (i, k)),
                pl.BlockSpec((gpt * sub, tn), lambda i, j, k: (k, j)),
                pl.BlockSpec((gpt, 2, tn), lambda i, j, k: (k, 0, j)),
            ],
            out_specs=pl.BlockSpec((tm, tn), lambda i, j, k: (i, j)),
            scratch_shapes=[pltpu.VMEM((tm, tn), jnp.float32)]),
        compiler_params=pltpu.CompilerParams(
            dimension_semantics=("parallel", "parallel", "arbitrary"),
            vmem_limit_bytes=_vmem_limit_bytes()),
    )(x2, proj["qweight"], proj["scale_bias"])


def fused_llama_mlp_forward(x, gate, up, down, *, group_size):
    """Equivalent of FusedLlamaMLPForQuantizedModel.forward(x)."""
    orig_shape = x.shape
    K = orig_shape[-1]
    x2 = x.reshape(-1, K).astype(jnp.bfloat16)           # MXU-native activation dtype
    M = x2.shape[0]
    intermediate = gate["qweight"].shape[1]
    outfeatures = down["qweight"].shape[1]

    tm = _pick_tm(M)
    M_pad = _round_up(M, tm)
    if M_pad != M:
        x2 = jnp.pad(x2, ((0, M_pad - M), (0, 0)))
    m_blocks = M_pad // tm

    # gate/up projection fused with SiLU*mul; intermediate kept in bf16.
    c = _gate_up_call(x2, gate, up, group_size,
                      tm=tm,
                      tn=_pick_tn(intermediate, m_blocks),
                      gpt=_pick_gpt(K, group_size))

    # down projection, output written directly as float16 (Triton QuantLinear dtype).
    out = _quant_matmul_call(c, down, group_size,
                             tm=tm,
                             tn=_pick_tn(outfeatures, m_blocks),
                             gpt=_pick_gpt(intermediate, group_size),
                             out_dtype=jnp.float16)
    out = out[:M]
    return out.reshape(orig_shape[:-1] + (outfeatures,))


# ----------------------------------------------------------------------------
# Deterministic synthetic GPTQ parameters (glue: packing / setup only).
# A real GPTQ checkpoint's qweight would be repacked offline into this
# per-group-block layout (pure host-side glue); semantics are identical.
# ----------------------------------------------------------------------------
def _pack_qweight_grouped(intw, group_size):
    K, N = intw.shape
    sub = group_size // PACK
    w = intw.reshape(K // group_size, PACK, sub, N)       # [group, nibble, row, n]
    qw = jnp.zeros((K // group_size, sub, N), dtype=jnp.int32)
    for j in range(PACK):
        qw = qw | (w[:, j].astype(jnp.int32) << (BITS * j))
    return qw.reshape(K // PACK, N)


def make_quant_params(key, in_features, out_features, group_size):
    assert group_size % PACK == 0 and in_features % group_size == 0
    k1, k2, k3 = jax.random.split(key, 3)
    intw = jax.random.randint(k1, (in_features, out_features), 0, MAXQ + 1,
                              dtype=jnp.int32)
    n_groups = in_features // group_size
    zeros = jax.random.randint(k2, (n_groups, out_features), 0, MAXQ,
                               dtype=jnp.int32)           # stored zero - 1 (GPTQ)
    scales = (jax.random.uniform(k3, (n_groups, out_features),
                                 dtype=jnp.float32) * 0.02 + 0.005)
    bias = -(zeros + 1).astype(jnp.float32) * scales      # folded zero-point
    # Merge scale + bias into one 16-bit HBM array -> single DMA stream per projection.
    scale_bias = jnp.stack([scales, bias], axis=1).astype(jnp.bfloat16)  # (g, 2, N)
    return dict(
        qweight=_pack_qweight_grouped(intw, group_size),
        scale_bias=scale_bias,
        # kept only for the pure-JAX reference check:
        _intweight=intw, _zeros2d=zeros, _scales2d=scales,
    )


def _dequant_ref(p, group_size):
    zeros_full = jnp.repeat(p["_zeros2d"], group_size, axis=0)
    scales_full = jnp.repeat(p["_scales2d"], group_size, axis=0)
    return (p["_intweight"] - (zeros_full + 1)).astype(jnp.float32) * scales_full


if __name__ == "__main__":
    key = jax.random.PRNGKey(0)
    B, S = 2, 4
    infeatures = 256
    intermediate_size = 256
    outfeatures = 256
    group_size = 128

    kx, kg, ku, kd = jax.random.split(key, 4)
    x = (jax.random.normal(kx, (B, S, infeatures), dtype=jnp.float32) * 0.5
         ).astype(jnp.float16)

    gate = make_quant_params(kg, infeatures, intermediate_size, group_size)
    up = make_quant_params(ku, infeatures, intermediate_size, group_size)
    down = make_quant_params(kd, intermediate_size, outfeatures, group_size)

    out = fused_llama_mlp_forward(x, gate, up, down, group_size=group_size)
    out = jax.block_until_ready(out)

    # pure-JAX reference (module semantics: f32 dequant + fp16 intermediate/output)
    x2 = x.reshape(-1, infeatures).astype(jnp.float32)
    Wg = _dequant_ref(gate, group_size)
    Wu = _dequant_ref(up, group_size)
    Wd = _dequant_ref(down, group_size)
    g = x2 @ Wg
    u = x2 @ Wu
    c_ref = (g * jax.nn.sigmoid(g) * u).astype(jnp.float16)
    ref = (c_ref.astype(jnp.float32) @ Wd).astype(jnp.float16)
    ref = ref.reshape(B, S, outfeatures)

    assert out.shape == (B, S, outfeatures)
    assert out.dtype == jnp.float16
    # Tolerance accounts for bf16 MXU inputs, bf16 dequant arithmetic and the bf16
    # intermediate vs the fp16/f32 Triton reference path; packing/indexing bugs would
    # produce O(1) errors.
    np.testing.assert_allclose(np.asarray(out, dtype=np.float32),
                               np.asarray(ref, dtype=np.float32),
                               rtol=5e-2, atol=5e-2)
    print("KERNEL_OK")
</pallas_src>

<mosaic_0001>
module attributes {stable_mosaic.version = 11 : i64} {
  func.func @_fused_gate_up_kernel(%arg0: i32, %arg1: i32, %arg2: i32, %arg3: memref<8x256xbf16, #tpu.memory_space<vmem>>, %arg4: memref<32x128xi32, #tpu.memory_space<vmem>>, %arg5: memref<2x2x128xbf16, #tpu.memory_space<vmem>>, %arg6: memref<32x128xi32, #tpu.memory_space<vmem>>, %arg7: memref<2x2x128xbf16, #tpu.memory_space<vmem>>, %arg8: memref<8x128xbf16, #tpu.memory_space<vmem>>, %arg9: memref<8x128xf32, #tpu.memory_space<vmem>>, %arg10: memref<8x128xf32, #tpu.memory_space<vmem>>) attributes {dimension_semantics = [#tpu.dimension_semantics<parallel>, #tpu.dimension_semantics<parallel>, #tpu.dimension_semantics<arbitrary>], iteration_bounds = array<i64: 1, 2, 1>, scalar_prefetch = 0 : i64, scratch_operands = 2 : i64, tpu.core_type = #tpu.core_type<tc>, window_params = [{transform_indices = @transform_0, window_bounds = array<i64: 8, 256>}, {transform_indices = @transform_1, window_bounds = array<i64: 32, 128>}, {transform_indices = @transform_2, window_bounds = array<i64: 2, 2, 128>}, {transform_indices = @transform_3, window_bounds = array<i64: 32, 128>}, {transform_indices = @transform_4, window_bounds = array<i64: 2, 2, 128>}, {transform_indices = @transform_5, window_bounds = array<i64: 8, 128>}]} {
    %c0_i32 = arith.constant 0 : i32
    %0 = arith.cmpi eq, %arg2, %c0_i32 : i32
    %1 = arith.extui %0 : i1 to i32
    %c0_i32_0 = arith.constant 0 : i32
    %2 = arith.cmpi ne, %1, %c0_i32_0 : i32
    scf.if %2 {
      %cst_89 = arith.constant 0.000000e+00 : f32
      %190 = vector.broadcast %cst_89 : f32 to vector<8x128xf32>
      %c0_90 = arith.constant 0 : index
      %c0_91 = arith.constant 0 : index
      %191 = vector.load %arg9[%c0_90, %c0_91] : memref<8x128xf32, #tpu.memory_space<vmem>>, vector<8x128xf32>
      tpu.vector_store %arg9[%c0_90, %c0_91], %190 {strides = array<i32>} : memref<8x128xf32, #tpu.memory_space<vmem>>, vector<8x128xf32>,
      %cst_92 = arith.constant 0.000000e+00 : f32
      %192 = vector.broadcast %cst_92 : f32 to vector<8x128xf32>
      %c0_93 = arith.constant 0 : index
      %c0_94 = arith.constant 0 : index
      %193 = vector.load %arg10[%c0_93, %c0_94] : memref<8x128xf32, #tpu.memory_space<vmem>>, vector<8x128xf32>
      tpu.vector_store %arg10[%c0_93, %c0_94], %192 {strides = array<i32>} : memref<8x128xf32, #tpu.memory_space<vmem>>, vector<8x128xf32>,
    } else {
    }
    %c0 = arith.constant 0 : index
    %c0_1 = arith.constant 0 : index
    %c0_2 = arith.constant 0 : index
    %3 = vector.load %arg5[%c0, %c0_1, %c0_2] : memref<2x2x128xbf16, #tpu.memory_space<vmem>>, vector<2x2x128xbf16>
    %c0_3 = arith.constant 0 : index
    %c0_4 = arith.constant 0 : index
    %c0_5 = arith.constant 0 : index
    %4 = vector.load %arg7[%c0_3, %c0_4, %c0_5] : memref<2x2x128xbf16, #tpu.memory_space<vmem>>, vector<2x2x128xbf16>
    %c0_6 = arith.constant 0 : index
    %c0_7 = arith.constant 0 : index
    %5 = vector.load %arg3[%c0_6, %c0_7] : memref<8x256xbf16, #tpu.memory_space<vmem>>, vector<8x128xbf16>
    %c0_8 = arith.constant 0 : index
    %c0_9 = arith.constant 0 : index
    %6 = vector.load %arg4[%c0_8, %c0_9] : memref<32x128xi32, #tpu.memory_space<vmem>>, vector<16x128xi32>
    %c15_i32 = arith.constant 15 : i32
    %7 = vector.broadcast %c15_i32 : i32 to vector<16x128xi32>
    %8 = arith.andi %6, %7 : vector<16x128xi32>
    %c4_i32 = arith.constant 4 : i32
    %9 = vector.broadcast %c4_i32 : i32 to vector<16x128xi32>
    %10 = arith.shrsi %6, %9 : vector<16x128xi32>
    %c15_i32_10 = arith.constant 15 : i32
    %11 = vector.broadcast %c15_i32_10 : i32 to vector<16x128xi32>
    %12 = arith.andi %10, %11 : vector<16x128xi32>
    %c8_i32 = arith.constant 8 : i32
    %13 = vector.broadcast %c8_i32 : i32 to vector<16x128xi32>
    %14 = arith.shrsi %6, %13 : vector<16x128xi32>
    %c15_i32_11 = arith.constant 15 : i32
    %15 = vector.broadcast %c15_i32_11 : i32 to vector<16x128xi32>
    %16 = arith.andi %14, %15 : vector<16x128xi32>
    %c12_i32 = arith.constant 12 : i32
    %17 = vector.broadcast %c12_i32 : i32 to vector<16x128xi32>
    %18 = arith.shrsi %6, %17 : vector<16x128xi32>
    %c15_i32_12 = arith.constant 15 : i32
    %19 = vector.broadcast %c15_i32_12 : i32 to vector<16x128xi32>
    %20 = arith.andi %18, %19 : vector<16x128xi32>
    %c16_i32 = arith.constant 16 : i32
    %21 = vector.broadcast %c16_i32 : i32 to vector<16x128xi32>
    %22 = arith.shrsi %6, %21 : vector<16x128xi32>
    %c15_i32_13 = arith.constant 15 : i32
    %23 = vector.broadcast %c15_i32_13 : i32 to vector<16x128xi32>
    %24 = arith.andi %22, %23 : vector<16x128xi32>
    %c20_i32 = arith.constant 20 : i32
    %25 = vector.broadcast %c20_i32 : i32 to vector<16x128xi32>
    %26 = arith.shrsi %6, %25 : vector<16x128xi32>
    %c15_i32_14 = arith.constant 15 : i32
    %27 = vector.broadcast %c15_i32_14 : i32 to vector<16x128xi32>
    %28 = arith.andi %26, %27 : vector<16x128xi32>
    %c24_i32 = arith.constant 24 : i32
    %29 = vector.broadcast %c24_i32 : i32 to vector<16x128xi32>
    %30 = arith.shrsi %6, %29 : vector<16x128xi32>
    %c15_i32_15 = arith.constant 15 : i32
    %31 = vector.broadcast %c15_i32_15 : i32 to vector<16x128xi32>
    %32 = arith.andi %30, %31 : vector<16x128xi32>
    %c28_i32 = arith.constant 28 : i32
    %33 = vector.broadcast %c28_i32 : i32 to vector<16x128xi32>
    %34 = arith.shrsi %6, %33 : vector<16x128xi32>
    %c15_i32_16 = arith.constant 15 : i32
    %35 = vector.broadcast %c15_i32_16 : i32 to vector<16x128xi32>
    %36 = arith.andi %34, %35 : vector<16x128xi32>
    %37 = tpu.concatenate %8, %12, %16, %20, %24, %28, %32, %36 in 0 : vector<16x128xi32>, vector<16x128xi32>, vector<16x128xi32>, vector<16x128xi32>, vector<16x128xi32>, vector<16x128xi32>, vector<16x128xi32>, vector<16x128xi32> -> vector<128x128xi32>
    %38 = vector.extract_strided_slice %3 {offsets = [0, 0, 0], sizes = [1, 1, 128], strides = [1, 1, 1]} : vector<2x2x128xbf16> to vector<1x1x128xbf16>
    %39 = vector.shape_cast %38 : vector<1x1x128xbf16> to vector<1x128xbf16>
    %40 = vector.extract_strided_slice %3 {offsets = [0, 1, 0], sizes = [1, 1, 128], strides = [1, 1, 1]} : vector<2x2x128xbf16> to vector<1x1x128xbf16>
    %41 = vector.shape_cast %40 : vector<1x1x128xbf16> to vector<1x128xbf16>
    %42 = arith.sitofp %37 : vector<128x128xi32> to vector<128x128xbf16>
    %43 = vector.broadcast %39 : vector<1x128xbf16> to vector<128x128xbf16>
    %44 = arith.mulf %42, %43 : vector<128x128xbf16>
    %45 = vector.broadcast %41 : vector<1x128xbf16> to vector<128x128xbf16>
    %46 = arith.addf %44, %45 : vector<128x128xbf16>
    %c0_17 = arith.constant 0 : index
    %c0_18 = arith.constant 0 : index
    %47 = vector.load %arg9[%c0_17, %c0_18] : memref<8x128xf32, #tpu.memory_space<vmem>>, vector<8x128xf32>
    %cst = arith.constant dense<0.000000e+00> : vector<8x128xf32>
    %48 = tpu.matmul %5, %46, %cst {dimension_numbers = #tpu.dot_dimension_numbers<[1], [0], [0], [1], [0, 0, 1, 1], [], []>} : vector<8x128xbf16>, vector<128x128xbf16>, vector<8x128xf32> -> vector<8x128xf32>
    %49 = arith.addf %47, %48 : vector<8x128xf32>
    %c0_19 = arith.constant 0 : index
    %c0_20 = arith.constant 0 : index
    %50 = vector.load %arg9[%c0_19, %c0_20] : memref<8x128xf32, #tpu.memory_space<vmem>>, vector<8x128xf32>
    tpu.vector_store %arg9[%c0_19, %c0_20], %49 {strides = array<i32>} : memref<8x128xf32, #tpu.memory_space<vmem>>, vector<8x128xf32>,
    %c0_21 = arith.constant 0 : index
    %c0_22 = arith.constant 0 : index
    %51 = vector.load %arg6[%c0_21, %c0_22] : memref<32x128xi32, #tpu.memory_space<vmem>>, vector<16x128xi32>
    %c15_i32_23 = arith.constant 15 : i32
    %52 = vector.broadcast %c15_i32_23 : i32 to vector<16x128xi32>
    %53 = arith.andi %51, %52 : vector<16x128xi32>
    %c4_i32_24 = arith.constant 4 : i32
    %54 = vector.broadcast %c4_i32_24 : i32 to vector<16x128xi32>
    %55 = arith.shrsi %51, %54 : vector<16x128xi32>
    %c15_i32_25 = arith.constant 15 : i32
    %56 = vector.broadcast %c15_i32_25 : i32 to vector<16x128xi32>
    %57 = arith.andi %55, %56 : vector<16x128xi32>
    %c8_i32_26 = arith.constant 8 : i32
    %58 = vector.broadcast %c8_i32_26 : i32 to vector<16x128xi32>
    %59 = arith.shrsi %51, %58 : vector<16x128xi32>
    %c15_i32_27 = arith.constant 15 : i32
    %60 = vector.broadcast %c15_i32_27 : i32 to vector<16x128xi32>
    %61 = arith.andi %59, %60 : vector<16x128xi32>
    %c12_i32_28 = arith.constant 12 : i32
    %62 = vector.broadcast %c12_i32_28 : i32 to vector<16x128xi32>
    %63 = arith.shrsi %51, %62 : vector<16x128xi32>
    %c15_i32_29 = arith.constant 15 : i32
    %64 = vector.broadcast %c15_i32_29 : i32 to vector<16x128xi32>
    %65 = arith.andi %63, %64 : vector<16x128xi32>
    %c16_i32_30 = arith.constant 16 : i32
    %66 = vector.broadcast %c16_i32_30 : i32 to vector<16x128xi32>
    %67 = arith.shrsi %51, %66 : vector<16x128xi32>
    %c15_i32_31 = arith.constant 15 : i32
    %68 = vector.broadcast %c15_i32_31 : i32 to vector<16x128xi32>
    %69 = arith.andi %67, %68 : vector<16x128xi32>
    %c20_i32_32 = arith.constant 20 : i32
    %70 = vector.broadcast %c20_i32_32 : i32 to vector<16x128xi32>
    %71 = arith.shrsi %51, %70 : vector<16x128xi32>
    %c15_i32_33 = arith.constant 15 : i32
    %72 = vector.broadcast %c15_i32_33 : i32 to vector<16x128xi32>
    %73 = arith.andi %71, %72 : vector<16x128xi32>
    %c24_i32_34 = arith.constant 24 : i32
    %74 = vector.broadcast %c24_i32_34 : i32 to vector<16x128xi32>
    %75 = arith.shrsi %51, %74 : vector<16x128xi32>
    %c15_i32_35 = arith.constant 15 : i32
    %76 = vector.broadcast %c15_i32_35 : i32 to vector<16x128xi32>
    %77 = arith.andi %75, %76 : vector<16x128xi32>
    %c28_i32_36 = arith.constant 28 : i32
    %78 = vector.broadcast %c28_i32_36 : i32 to vector<16x128xi32>
    %79 = arith.shrsi %51, %78 : vector<16x128xi32>
    %c15_i32_37 = arith.constant 15 : i32
    %80 = vector.broadcast %c15_i32_37 : i32 to vector<16x128xi32>
    %81 = arith.andi %79, %80 : vector<16x128xi32>
    %82 = tpu.concatenate %53, %57, %61, %65, %69, %73, %77, %81 in 0 : vector<16x128xi32>, vector<16x128xi32>, vector<16x128xi32>, vector<16x128xi32>, vector<16x128xi32>, vector<16x128xi32>, vector<16x128xi32>, vector<16x128xi32> -> vector<128x128xi32>
    %83 = vector.extract_strided_slice %4 {offsets = [0, 0, 0], sizes = [1, 1, 128], strides = [1, 1, 1]} : vector<2x2x128xbf16> to vector<1x1x128xbf16>
    %84 = vector.shape_cast %83 : vector<1x1x128xbf16> to vector<1x128xbf16>
    %85 = vector.extract_strided_slice %4 {offsets = [0, 1, 0], sizes = [1, 1, 128], strides = [1, 1, 1]} : vector<2x2x128xbf16> to vector<1x1x128xbf16>
    %86 = vector.shape_cast %85 : vector<1x1x128xbf16> to vector<1x128xbf16>
    %87 = arith.sitofp %82 : vector<128x128xi32> to vector<128x128xbf16>
    %88 = vector.broadcast %84 : vector<1x128xbf16> to vector<128x128xbf16>
    %89 = arith.mulf %87, %88 : vector<128x128xbf16>
    %90 = vector.broadcast %86 : vector<1x128xbf16> to vector<128x128xbf16>
    %91 = arith.addf %89, %90 : vector<128x128xbf16>
    %c0_38 = arith.constant 0 : index
    %c0_39 = arith.constant 0 : index
    %92 = vector.load %arg10[%c0_38, %c0_39] : memref<8x128xf32, #tpu.memory_space<vmem>>, vector<8x128xf32>
    %cst_40 = arith.constant dense<0.000000e+00> : vector<8x128xf32>
    %93 = tpu.matmul %5, %91, %cst_40 {dimension_numbers = #tpu.dot_dimension_numbers<[1], [0], [0], [1], [0, 0, 1, 1], [], []>} : vector<8x128xbf16>, vector<128x128xbf16>, vector<8x128xf32> -> vector<8x128xf32>
    %94 = arith.addf %92, %93 : vector<8x128xf32>
    %c0_41 = arith.constant 0 : index
    %c0_42 = arith.constant 0 : index
    %95 = vector.load %arg10[%c0_41, %c0_42] : memref<8x128xf32, #tpu.memory_space<vmem>>, vector<8x128xf32>
    tpu.vector_store %arg10[%c0_41, %c0_42], %94 {strides = array<i32>} : memref<8x128xf32, #tpu.memory_space<vmem>>, vector<8x128xf32>,
    %c0_43 = arith.constant 0 : index
    %c128 = arith.constant 128 : index
    %96 = vector.load %arg3[%c0_43, %c128] : memref<8x256xbf16, #tpu.memory_space<vmem>>, vector<8x128xbf16>
    %c16 = arith.constant 16 : index
    %c0_44 = arith.constant 0 : index
    %97 = vector.load %arg4[%c16, %c0_44] : memref<32x128xi32, #tpu.memory_space<vmem>>, vector<16x128xi32>
    %c15_i32_45 = arith.constant 15 : i32
    %98 = vector.broadcast %c15_i32_45 : i32 to vector<16x128xi32>
    %99 = arith.andi %97, %98 : vector<16x128xi32>
    %c4_i32_46 = arith.constant 4 : i32
    %100 = vector.broadcast %c4_i32_46 : i32 to vector<16x128xi32>
    %101 = arith.shrsi %97, %100 : vector<16x128xi32>
    %c15_i32_47 = arith.constant 15 : i32
    %102 = vector.broadcast %c15_i32_47 : i32 to vector<16x128xi32>
    %103 = arith.andi %101, %102 : vector<16x128xi32>
    %c8_i32_48 = arith.constant 8 : i32
    %104 = vector.broadcast %c8_i32_48 : i32 to vector<16x128xi32>
    %105 = arith.shrsi %97, %104 : vector<16x128xi32>
    %c15_i32_49 = arith.constant 15 : i32
    %106 = vector.broadcast %c15_i32_49 : i32 to vector<16x128xi32>
    %107 = arith.andi %105, %106 : vector<16x128xi32>
    %c12_i32_50 = arith.constant 12 : i32
    %108 = vector.broadcast %c12_i32_50 : i32 to vector<16x128xi32>
    %109 = arith.shrsi %97, %108 : vector<16x128xi32>
    %c15_i32_51 = arith.constant 15 : i32
    %110 = vector.broadcast %c15_i32_51 : i32 to vector<16x128xi32>
    %111 = arith.andi %109, %110 : vector<16x128xi32>
    %c16_i32_52 = arith.constant 16 : i32
    %112 = vector.broadcast %c16_i32_52 : i32 to vector<16x128xi32>
    %113 = arith.shrsi %97, %112 : vector<16x128xi32>
    %c15_i32_53 = arith.constant 15 : i32
    %114 = vector.broadcast %c15_i32_53 : i32 to vector<16x128xi32>
    %115 = arith.andi %113, %114 : vector<16x128xi32>
    %c20_i32_54 = arith.constant 20 : i32
    %116 = vector.broadcast %c20_i32_54 : i32 to vector<16x128xi32>
    %117 = arith.shrsi %97, %116 : vector<16x128xi32>
    %c15_i32_55 = arith.constant 15 : i32
    %118 = vector.broadcast %c15_i32_55 : i32 to vector<16x128xi32>
    %119 = arith.andi %117, %118 : vector<16x128xi32>
    %c24_i32_56 = arith.constant 24 : i32
    %120 = vector.broadcast %c24_i32_56 : i32 to vector<16x128xi32>
    %121 = arith.shrsi %97, %120 : vector<16x128xi32>
    %c15_i32_57 = arith.constant 15 : i32
    %122 = vector.broadcast %c15_i32_57 : i32 to vector<16x128xi32>
    %123 = arith.andi %121, %122 : vector<16x128xi32>
    %c28_i32_58 = arith.constant 28 : i32
    %124 = vector.broadcast %c28_i32_58 : i32 to vector<16x128xi32>
    %125 = arith.shrsi %97, %124 : vector<16x128xi32>
    %c15_i32_59 = arith.constant 15 : i32
    %126 = vector.broadcast %c15_i32_59 : i32 to vector<16x128xi32>
    %127 = arith.andi %125, %126 : vector<16x128xi32>
    %128 = tpu.concatenate %99, %103, %107, %111, %115, %119, %123, %127 in 0 : vector<16x128xi32>, vector<16x128xi32>, vector<16x128xi32>, vector<16x128xi32>, vector<16x128xi32>, vector<16x128xi32>, vector<16x128xi32>, vector<16x128xi32> -> vector<128x128xi32>
    %129 = vector.extract_strided_slice %3 {offsets = [1, 0, 0], sizes = [1, 1, 128], strides = [1, 1, 1]} : vector<2x2x128xbf16> to vector<1x1x128xbf16>
    %130 = vector.shape_cast %129 : vector<1x1x128xbf16> to vector<1x128xbf16>
    %131 = vector.extract_strided_slice %3 {offsets = [1, 1, 0], sizes = [1, 1, 128], strides = [1, 1, 1]} : vector<2x2x128xbf16> to vector<1x1x128xbf16>
    %132 = vector.shape_cast %131 : vector<1x1x128xbf16> to vector<1x128xbf16>
    %133 = arith.sitofp %128 : vector<128x128xi32> to vector<128x128xbf16>
    %134 = vector.broadcast %130 : vector<1x128xbf16> to vector<128x128xbf16>
    %135 = arith.mulf %133, %134 : vector<128x128xbf16>
    %136 = vector.broadcast %132 : vector<1x128xbf16> to vector<128x128xbf16>
    %137 = arith.addf %135, %136 : vector<128x128xbf16>
    %c0_60 = arith.constant 0 : index
    %c0_61 = arith.constant 0 : index
    %138 = vector.load %arg9[%c0_60, %c0_61] : memref<8x128xf32, #tpu.memory_space<vmem>>, vector<8x128xf32>
    %cst_62 = arith.constant dense<0.000000e+00> : vector<8x128xf32>
    %139 = tpu.matmul %96, %137, %cst_62 {dimension_numbers = #tpu.dot_dimension_numbers<[1], [0], [0], [1], [0, 0, 1, 1], [], []>} : vector<8x128xbf16>, vector<128x128xbf16>, vector<8x128xf32> -> vector<8x128xf32>
    %140 = arith.addf %138, %139 : vector<8x128xf32>
    %c0_63 = arith.constant 0 : index
    %c0_64 = arith.constant 0 : index
    %141 = vector.load %arg9[%c0_63, %c0_64] : memref<8x128xf32, #tpu.memory_space<vmem>>, vector<8x128xf32>
    tpu.vector_store %arg9[%c0_63, %c0_64], %140 {strides = array<i32>} : memref<8x128xf32, #tpu.memory_space<vmem>>, vector<8x128xf32>,
    %c16_65 = arith.constant 16 : index
    %c0_66 = arith.constant 0 : index
    %142 = vector.load %arg6[%c16_65, %c0_66] : memref<32x128xi32, #tpu.memory_space<vmem>>, vector<16x128xi32>
    %c15_i32_67 = arith.constant 15 : i32
    %143 = vector.broadcast %c15_i32_67 : i32 to vector<16x128xi32>
    %144 = arith.andi %142, %143 : vector<16x128xi32>
    %c4_i32_68 = arith.constant 4 : i32
    %145 = vector.broadcast %c4_i32_68 : i32 to vector<16x128xi32>
    %146 = arith.shrsi %142, %145 : vector<16x128xi32>
    %c15_i32_69 = arith.constant 15 : i32
    %147 = vector.broadcast %c15_i32_69 : i32 to vector<16x128xi32>
    %148 = arith.andi %146, %147 : vector<16x128xi32>
    %c8_i32_70 = arith.constant 8 : i32
    %149 = vector.broadcast %c8_i32_70 : i32 to vector<16x128xi32>
    %150 = arith.shrsi %142, %149 : vector<16x128xi32>
    %c15_i32_71 = arith.constant 15 : i32
    %151 = vector.broadcast %c15_i32_71 : i32 to vector<16x128xi32>
    %152 = arith.andi %150, %151 : vector<16x128xi32>
    %c12_i32_72 = arith.constant 12 : i32
    %153 = vector.broadcast %c12_i32_72 : i32 to vector<16x128xi32>
    %154 = arith.shrsi %142, %153 : vector<16x128xi32>
    %c15_i32_73 = arith.constant 15 : i32
    %155 = vector.broadcast %c15_i32_73 : i32 to vector<16x128xi32>
    %156 = arith.andi %154, %155 : vector<16x128xi32>
    %c16_i32_74 = arith.constant 16 : i32
    %157 = vector.broadcast %c16_i32_74 : i32 to vector<16x128xi32>
    %158 = arith.shrsi %142, %157 : vector<16x128xi32>
    %c15_i32_75 = arith.constant 15 : i32
    %159 = vector.broadcast %c15_i32_75 : i32 to vector<16x128xi32>
    %160 = arith.andi %158, %159 : vector<16x128xi32>
    %c20_i32_76 = arith.constant 20 : i32
    %161 = vector.broadcast %c20_i32_76 : i32 to vector<16x128xi32>
    %162 = arith.shrsi %142, %161 : vector<16x128xi32>
    %c15_i32_77 = arith.constant 15 : i32
    %163 = vector.broadcast %c15_i32_77 : i32 to vector<16x128xi32>
    %164 = arith.andi %162, %163 : vector<16x128xi32>
    %c24_i32_78 = arith.constant 24 : i32
    %165 = vector.broadcast %c24_i32_78 : i32 to vector<16x128xi32>
    %166 = arith.shrsi %142, %165 : vector<16x128xi32>
    %c15_i32_79 = arith.constant 15 : i32
    %167 = vector.broadcast %c15_i32_79 : i32 to vector<16x128xi32>
    %168 = arith.andi %166, %167 : vector<16x128xi32>
    %c28_i32_80 = arith.constant 28 : i32
    %169 = vector.broadcast %c28_i32_80 : i32 to vector<16x128xi32>
    %170 = arith.shrsi %142, %169 : vector<16x128xi32>
    %c15_i32_81 = arith.constant 15 : i32
    %171 = vector.broadcast %c15_i32_81 : i32 to vector<16x128xi32>
    %172 = arith.andi %170, %171 : vector<16x128xi32>
    %173 = tpu.concatenate %144, %148, %152, %156, %160, %164, %168, %172 in 0 : vector<16x128xi32>, vector<16x128xi32>, vector<16x128xi32>, vector<16x128xi32>, vector<16x128xi32>, vector<16x128xi32>, vector<16x128xi32>, vector<16x128xi32> -> vector<128x128xi32>
    %174 = vector.extract_strided_slice %4 {offsets = [1, 0, 0], sizes = [1, 1, 128], strides = [1, 1, 1]} : vector<2x2x128xbf16> to vector<1x1x128xbf16>
    %175 = vector.shape_cast %174 : vector<1x1x128xbf16> to vector<1x128xbf16>
    %176 = vector.extract_strided_slice %4 {offsets = [1, 1, 0], sizes = [1, 1, 128], strides = [1, 1, 1]} : vector<2x2x128xbf16> to vector<1x1x128xbf16>
    %177 = vector.shape_cast %176 : vector<1x1x128xbf16> to vector<1x128xbf16>
    %178 = arith.sitofp %173 : vector<128x128xi32> to vector<128x128xbf16>
    %179 = vector.broadcast %175 : vector<1x128xbf16> to vector<128x128xbf16>
    %180 = arith.mulf %178, %179 : vector<128x128xbf16>
    %181 = vector.broadcast %177 : vector<1x128xbf16> to vector<128x128xbf16>
    %182 = arith.addf %180, %181 : vector<128x128xbf16>
    %c0_82 = arith.constant 0 : index
    %c0_83 = arith.constant 0 : index
    %183 = vector.load %arg10[%c0_82, %c0_83] : memref<8x128xf32, #tpu.memory_space<vmem>>, vector<8x128xf32>
    %cst_84 = arith.constant dense<0.000000e+00> : vector<8x128xf32>
    %184 = tpu.matmul %96, %182, %cst_84 {dimension_numbers = #tpu.dot_dimension_numbers<[1], [0], [0], [1], [0, 0, 1, 1], [], []>} : vector<8x128xbf16>, vector<128x128xbf16>, vector<8x128xf32> -> vector<8x128xf32>
    %185 = arith.addf %183, %184 : vector<8x128xf32>
    %c0_85 = arith.constant 0 : index
    %c0_86 = arith.constant 0 : index
    %186 = vector.load %arg10[%c0_85, %c0_86] : memref<8x128xf32, #tpu.memory_space<vmem>>, vector<8x128xf32>
    tpu.vector_store %arg10[%c0_85, %c0_86], %185 {strides = array<i32>} : memref<8x128xf32, #tpu.memory_space<vmem>>, vector<8x128xf32>,
    %c0_i32_87 = arith.constant 0 : i32
    %187 = arith.cmpi eq, %arg2, %c0_i32_87 : i32
    %188 = arith.extui %187 : i1 to i32
    %c0_i32_88 = arith.constant 0 : i32
    %189 = arith.cmpi ne, %188, %c0_i32_88 : i32
    scf.if %189 {
      %c0_89 = arith.constant 0 : index
      %c0_90 = arith.constant 0 : index
      %190 = vector.load %arg9[%c0_89, %c0_90] : memref<8x128xf32, #tpu.memory_space<vmem>>, vector<8x128xf32>
      %191 = arith.negf %190 : vector<8x128xf32>
      %192 = math.exp %191 : vector<8x128xf32>
      %cst_91 = arith.constant 1.000000e+00 : f32
      %193 = vector.broadcast %cst_91 : f32 to vector<8x128xf32>
      %194 = arith.addf %193, %192 : vector<8x128xf32>
      %195 = arith.divf %193, %194 : vector<8x128xf32>
      %196 = arith.mulf %190, %195 : vector<8x128xf32>
      %c0_92 = arith.constant 0 : index
      %c0_93 = arith.constant 0 : index
      %197 = vector.load %arg10[%c0_92, %c0_93] : memref<8x128xf32, #tpu.memory_space<vmem>>, vector<8x128xf32>
      %198 = arith.mulf %196, %197 : vector<8x128xf32>
      %199 = arith.truncf %198 : vector<8x128xf32> to vector<8x128xbf16>
      %c0_94 = arith.constant 0 : index
      %c0_95 = arith.constant 0 : index
      %200 = vector.load %arg8[%c0_94, %c0_95] : memref<8x128xbf16, #tpu.memory_space<vmem>>, vector<8x128xbf16>
      tpu.vector_store %arg8[%c0_94, %c0_95], %199 {strides = array<i32>} : memref<8x128xbf16, #tpu.memory_space<vmem>>, vector<8x128xbf16>,
    } else {
    }
    return
  }
  func.func @transform_0(%arg0: i32, %arg1: i32, %arg2: i32) -> (i32, i32) {
    %c0_i32 = arith.constant 0 : i32
    return %arg0, %arg2 : i32, i32
  }
  func.func @transform_1(%arg0: i32, %arg1: i32, %arg2: i32) -> (i32, i32) {
    %c0_i32 = arith.constant 0 : i32
    return %arg2, %arg1 : i32, i32
  }
  func.func @transform_2(%arg0: i32, %arg1: i32, %arg2: i32) -> (i32, i32, i32) {
    %c0_i32 = arith.constant 0 : i32
    %c0_i32_0 = arith.constant 0 : i32
    return %arg2, %c0_i32, %arg1 : i32, i32, i32
  }
  func.func @transform_3(%arg0: i32, %arg1: i32, %arg2: i32) -> (i32, i32) {
    %c0_i32 = arith.constant 0 : i32
    return %arg2, %arg1 : i32, i32
  }
  func.func @transform_4(%arg0: i32, %arg1: i32, %arg2: i32) -> (i32, i32, i32) {
    %c0_i32 = arith.constant 0 : i32
    %c0_i32_0 = arith.constant 0 : i32
    return %arg2, %c0_i32, %arg1 : i32, i32, i32
  }
  func.func @transform_5(%arg0: i32, %arg1: i32, %arg2: i32) -> (i32, i32) {
    %c0_i32 = arith.constant 0 : i32
    return %arg0, %arg1 : i32, i32
  }
}

</mosaic_0001>

<llo_original>
// kernel: tpu_custom_call.1
$region0: #{tpu_custom_call.1}
  #allocation0 [shape = 'u32[]', space=smem, size = 0x4, offset = 0x4, fixed_abs, tag = 'smem constant byte address 0x4 - core index']
  #allocation1 [shape = 'u32[144,128]{1,0:T(1,128)}', space=vmem, size = 0x12000, scoped, tag = 'internal scratch']
  #allocation2 [shape = 'f32[8,128]{1,0:T(8,128)}', space=vmem, size = 0x1000, scoped, tag = 'scratch operand']
  #allocation3 [shape = 'f32[8,128]{1,0:T(8,128)}', space=vmem, size = 0x1000, scoped, tag = 'scratch operand']
  %s0 = inlined_call_operand.hbm [shape: bf16[8,256], index: 0, kind: input, shape index: {}]
  %s1 = inlined_call_operand.hbm [shape: s32[32,256], index: 1, kind: input, shape index: {}]
  %s2 = inlined_call_operand.vmem [shape: bf16[2,2,256], index: 2, kind: input, shape index: {}]
  %s3 = inlined_call_operand.hbm [shape: s32[32,256], index: 3, kind: input, shape index: {}]
  %s4 = inlined_call_operand.vmem [shape: bf16[2,2,256], index: 4, kind: input, shape index: {}]
  %s5 = inlined_call_operand.hbm [shape: bf16[8,256], index: 5, kind: output, shape index: {}]
  %s6 = sld [smem:[#allocation0]]
  $region141: #{tpu_custom_call.1} parent=0
    _
  %s8 = ssub.s32 1, %s6
  %s9 = scalar_select 0, %s8, %s6
  $region1: #{tpu_custom_call.1} parent=0
    #allocation4 [shape = 'u8[4096]{0}', space=vmem, size = 0x1000, scoped, tag = 'input window, operand 0, single buffered']
    #allocation5 [shape = 's32[2]{0}', space=sflag, size = 0x8, scoped, tag = 'scoped memory for tpu_custom_call.1']
    #allocation6 [shape = 's32[2]{0}', space=sflag, size = 0x8, scoped, tag = 'scoped memory for tpu_custom_call.1']
    #allocation7 [shape = 'u8[32768]{0}', space=vmem, size = 0x8000, scoped, tag = 'input window, operand 1']
    #allocation8 [shape = 's32[2]{0}', space=sflag, size = 0x8, scoped, tag = 'scoped memory for tpu_custom_call.1']
    #allocation9 [shape = 'u8[2048]{0}', space=vmem, size = 0x800, scoped, tag = 'input window, operand 2']
    #allocation10 [shape = 'u8[32768]{0}', space=vmem, size = 0x8000, scoped, tag = 'input window, operand 3']
    #allocation11 [shape = 'u8[2048]{0}', space=vmem, size = 0x800, scoped, tag = 'input window, operand 4']
    #allocation12 [shape = 'u8[4096]{0}', space=vmem, size = 0x1000, scoped, tag = 'output window, operand 0']
    %10 = vsyncpa [#allocation5], 0
    %11 = vsyncpa [#allocation8], 0
    %s12 = scalar_lea.sflag [#allocation8], 1
    %13 = vsyncpa %s12, 0
    %14 = vsyncpa [#allocation6], 0
    %s15 = scalar_lea.sflag [#allocation6], 1
    %16 = vsyncpa %s15, 0
    loop: start=0, step=1, limit=4
    $region2: #{tpu_custom_call.1} parent=1 // loop_pre_header
      _
    $region3: #{tpu_custom_call.1} parent=1 // loop_header
      %s18 = sphi 0, %s22
      %p19 = scmp.ge.s32.totalorder %s18, 4
      %s25 = sphi 0, %s44
      %s26 = sphi 0, %s40
      %s27 = sphi 0, %s36
      %s28 = sphi 0, %s25
      %s29 = sphi 0, %s26
      %s30 = sphi 0, %s27
      %s31 = sphi 0, %s28
      %s32 = sphi 0, %s29
      %s33 = sphi 0, %s30
      %s49 = sphi 0, %s51
      %s52 = sphi 0, %s49
      %s53 = sphi 0, %s52
      %s69 = sphi 0, %s53
      %s77 = sphi 0, %s79
      %s80 = sphi 0, %s77
      %s81 = sphi 0, %s80
      %s97 = sphi 0, %s81
      %s105 = sphi 0, %s107
      %s108 = sphi 0, %s105
      %s109 = sphi 0, %s108
      %s125 = sphi 0, %s109
      %s133 = sphi 0, %s135
      %s136 = sphi 0, %s133
      %s137 = sphi 0, %s136
      %s153 = sphi 0, %s137
      %s161 = sphi 0, %s163
      %s164 = sphi 0, %s161
      %s165 = sphi 0, %s164
      %s181 = sphi 0, %s165
      %s189 = sphi 0, %s191
      %s192 = sphi 0, %s189
      %s193 = sphi 0, %s192
      %s209 = sphi 0, %s193
    $region4: #{tpu_custom_call.1} parent=1 // loop_header_branch
      %21 = sbr.rel (%p19) target = $region8
    $region5: #{tpu_custom_call.1} parent=1 // loop_body
      %s23 = ssub.s32 %s18, 1
      %s24 = ssub.s32 %s18, 2
      %s34 = sadd.s32 1, %s27
      %p35 = scmp.ge.s32.totalorder %s34, 1
      %s36 = scalar_select %p35, 0, %s34
      %s37 = sadd.s32 1, %s26
      %s38 = scalar_select %p35, %s37, %s26
      %p39 = scmp.ge.s32.totalorder %s38, 2
      %s40 = scalar_select %p39, 0, %s38
      %s41 = sadd.s32 1, %s25
      %s42 = scalar_select %p39, %s41, %s25
      %p43 = scmp.ge.s32.totalorder %s42, 1
      %s44 = scalar_select %p43, 0, %s42
      %s45 = ssub.s32 %s25, %s44
      %s46 = ssub.s32 %s27, %s36
      %s47 = sor.u32 %s45, %s46
      %p48 = scmp.eq.s32.totalorder %s47, 0
      %s50 = sadd.s32 %s49, 1
      %s51 = scalar_select %p48, %s49, %s50
      %p54 = pneg %p48
      %p55 = scmp.eq.s32.totalorder %s18, 1
      %p56 = por %p54, %p55
      %p57 = scmp.ne.s32.totalorder %s49, %s52
      %p58 = scmp.eq.s32.totalorder %s18, 0
      %p59 = por %p57, %p58
      %p60 = scmp.ne.s32.totalorder %s49, %s52
      %p61 = scmp.eq.s32.totalorder %s23, 1
      %p62 = por %p60, %p61
      %p63 = scmp.ne.s32.totalorder %s52, %s53
      %p64 = scmp.eq.s32.totalorder %s23, 0
      %p65 = por %p63, %p64
      %p66 = scmp.ne.s32.totalorder %s52, %s53
      %p67 = scmp.eq.s32.totalorder %s24, 1
      %p68 = por %p66, %p67
      %p70 = scmp.ne.s32.totalorder %s53, %s69
      %p71 = scmp.eq.s32.totalorder %s24, 0
      %p72 = por %p70, %p71
      %s73 = ssub.s32 %s27, %s36
      %s74 = ssub.s32 %s26, %s40
      %s75 = sor.u32 %s73, %s74
      %p76 = scmp.eq.s32.totalorder %s75, 0
      %s78 = sadd.s32 %s77, 1
      %s79 = scalar_select %p76, %s77, %s78
      %p82 = pneg %p76
      %p83 = scmp.eq.s32.totalorder %s18, 1
      %p84 = por %p82, %p83
      %p85 = scmp.ne.s32.totalorder %s77, %s80
      %p86 = scmp.eq.s32.totalorder %s18, 0
      %p87 = por %p85, %p86
      %p88 = scmp.ne.s32.totalorder %s77, %s80
      %p89 = scmp.eq.s32.totalorder %s23, 1
      %p90 = por %p88, %p89
      %p91 = scmp.ne.s32.totalorder %s80, %s81
      %p92 = scmp.eq.s32.totalorder %s23, 0
      %p93 = por %p91, %p92
      %p94 = scmp.ne.s32.totalorder %s80, %s81
      %p95 = scmp.eq.s32.totalorder %s24, 1
      %p96 = por %p94, %p95
      %p98 = scmp.ne.s32.totalorder %s81, %s97
      %p99 = scmp.eq.s32.totalorder %s24, 0
      %p100 = por %p98, %p99
      %s101 = ssub.s32 %s27, %s36
      %s102 = ssub.s32 %s26, %s40
      %s103 = sor.u32 %s101, %s102
      %p104 = scmp.eq.s32.totalorder %s103, 0
      %s106 = sadd.s32 %s105, 1
      %s107 = scalar_select %p104, %s105, %s106
      %p110 = pneg %p104
      %p111 = scmp.eq.s32.totalorder %s18, 1
      %p112 = por %p110, %p111
      %p113 = scmp.ne.s32.totalorder %s105, %s108
      %p114 = scmp.eq.s32.totalorder %s18, 0
      %p115 = por %p113, %p114
      %p116 = scmp.ne.s32.totalorder %s105, %s108
      %p117 = scmp.eq.s32.totalorder %s23, 1
      %p118 = por %p116, %p117
      %p119 = scmp.ne.s32.totalorder %s108, %s109
      %p120 = scmp.eq.s32.totalorder %s23, 0
      %p121 = por %p119, %p120
      %p122 = scmp.ne.s32.totalorder %s108, %s109
      %p123 = scmp.eq.s32.totalorder %s24, 1
      %p124 = por %p122, %p123
      %p126 = scmp.ne.s32.totalorder %s109, %s125
      %p127 = scmp.eq.s32.totalorder %s24, 0
      %p128 = por %p126, %p127
      %s129 = ssub.s32 %s27, %s36
      %s130 = ssub.s32 %s26, %s40
      %s131 = sor.u32 %s129, %s130
      %p132 = scmp.eq.s32.totalorder %s131, 0
      %s134 = sadd.s32 %s133, 1
      %s135 = scalar_select %p132, %s133, %s134
      %p138 = pneg %p132
      %p139 = scmp.eq.s32.totalorder %s18, 1
      %p140 = por %p138, %p139
      %p141 = scmp.ne.s32.totalorder %s133, %s136
      %p142 = scmp.eq.s32.totalorder %s18, 0
      %p143 = por %p141, %p142
      %p144 = scmp.ne.s32.totalorder %s133, %s136
      %p145 = scmp.eq.s32.totalorder %s23, 1
      %p146 = por %p144, %p145
      %p147 = scmp.ne.s32.totalorder %s136, %s137
      %p148 = scmp.eq.s32.totalorder %s23, 0
      %p149 = por %p147, %p148
      %p150 = scmp.ne.s32.totalorder %s136, %s137
      %p151 = scmp.eq.s32.totalorder %s24, 1
      %p152 = por %p150, %p151
      %p154 = scmp.ne.s32.totalorder %s137, %s153
      %p155 = scmp.eq.s32.totalorder %s24, 0
      %p156 = por %p154, %p155
      %s157 = ssub.s32 %s27, %s36
      %s158 = ssub.s32 %s26, %s40
      %s159 = sor.u32 %s157, %s158
      %p160 = scmp.eq.s32.totalorder %s159, 0
      %s162 = sadd.s32 %s161, 1
      %s163 = scalar_select %p160, %s161, %s162
      %p166 = pneg %p160
      %p167 = scmp.eq.s32.totalorder %s18, 1
      %p168 = por %p166, %p167
      %p169 = scmp.ne.s32.totalorder %s161, %s164
      %p170 = scmp.eq.s32.totalorder %s18, 0
      %p171 = por %p169, %p170
      %p172 = scmp.ne.s32.totalorder %s161, %s164
      %p173 = scmp.eq.s32.totalorder %s23, 1
      %p174 = por %p172, %p173
      %p175 = scmp.ne.s32.totalorder %s164, %s165
      %p176 = scmp.eq.s32.totalorder %s23, 0
      %p177 = por %p175, %p176
      %p178 = scmp.ne.s32.totalorder %s164, %s165
      %p179 = scmp.eq.s32.totalorder %s24, 1
      %p180 = por %p178, %p179
      %p182 = scmp.ne.s32.totalorder %s165, %s181
      %p183 = scmp.eq.s32.totalorder %s24, 0
      %p184 = por %p182, %p183
      %s185 = ssub.s32 %s25, %s44
      %s186 = ssub.s32 %s26, %s40
      %s187 = sor.u32 %s185, %s186
      %p188 = scmp.eq.s32.totalorder %s187, 0
      %s190 = sadd.s32 %s189, 1
      %s191 = scalar_select %p188, %s189, %s190
      %p194 = pneg %p188
      %p195 = scmp.eq.s32.totalorder %s18, 1
      %p196 = por %p194, %p195
      %p197 = scmp.ne.s32.totalorder %s189, %s192
      %p198 = scmp.eq.s32.totalorder %s18, 0
      %p199 = por %p197, %p198
      %p200 = scmp.ne.s32.totalorder %s189, %s192
      %p201 = scmp.eq.s32.totalorder %s23, 1
      %p202 = por %p200, %p201
      %p203 = scmp.ne.s32.totalorder %s192, %s193
      %p204 = scmp.eq.s32.totalorder %s23, 0
      %p205 = por %p203, %p204
      %p206 = scmp.ne.s32.totalorder %s192, %s193
      %p207 = scmp.eq.s32.totalorder %s24, 1
      %p208 = por %p206, %p207
      %p210 = scmp.ne.s32.totalorder %s193, %s209
      %p211 = scmp.eq.s32.totalorder %s24, 0
      %p212 = por %p210, %p211
      %p213 = scmp.le.s32.totalorder 1, %s18
      %p214 = scmp.lt.s32.totalorder %s18, 3
      %p215 = pnand %p213, %p214
      %p216 = pneg %p215
      // Predicated region
      $region9: #{tpu_custom_call.1} parent=5 // pred_check
        _
      $region10: #{tpu_custom_call.1} parent=5 // pred_check_branch
        %218 = sbr.rel (%p215) target = $region12
      $region11: #{tpu_custom_call.1} parent=5 // pred_region
        %s219 = ssub.s32 %s18, 1
        // Predicated region
        $region13: #{tpu_custom_call.1} parent=11 // pred_check
          %p220 = pneg %p65
        $region14: #{tpu_custom_call.1} parent=11 // pred_check_branch
          %222 = sbr.rel (%p220) target = $region16
        $region15: #{tpu_custom_call.1} parent=11 // pred_region
          %s223 = smul.u32 2, %s30
          %s225 = ssub.s32 128, 128
          %226 = vsyncadd [#allocation5], %s225
          %s227 = smul.addr %s28, 2
          %s228 = sadd.s32 %s223, %s227
          %s229 = smul.addr %s228, 64
          %s230 = scalar_lea.hbm %s0, %s229
          %s232 = sshll.u32 [#allocation4], 4
          %s233 = int_to_ptr.vmem [resolvable:$true] %s232
          %235 = dma.hbm_to_vmem [thread:$0]  %s230, 128, %s233, [#allocation5]
        $region16: #{tpu_custom_call.1} parent=11 // pred_fallthru
          _
      $region12: #{tpu_custom_call.1} parent=5 // pred_fallthru
        _
      %p236 = scmp.lt.s32.totalorder %s18, 2
      // Predicated region
      $region17: #{tpu_custom_call.1} parent=5 // pred_check
        %p237 = pneg %p236
      $region18: #{tpu_custom_call.1} parent=5 // pred_check_branch
        %239 = sbr.rel (%p237) target = $region20
      $region19: #{tpu_custom_call.1} parent=5 // pred_region
        // Predicated region
        $region21: #{tpu_custom_call.1} parent=19 // pred_check
          %p240 = pneg %p87
        $region22: #{tpu_custom_call.1} parent=19 // pred_check_branch
          %242 = sbr.rel (%p240) target = $region24
        $region23: #{tpu_custom_call.1} parent=19 // pred_region
          %s243 = sand.u32 %s18, 1
          %s244 = scalar_lea.sflag [#allocation8], %s243
          %s245 = sand.u32 %s77, 1
          %s246 = smul.addr %s245, 32
          %s247 = scalar_lea.vmem [#allocation7], %s246
          %s248 = smul.u32 4, %s27
          %s250 = ssub.s32 512, 512
          %251 = vsyncadd %s244, %s250
          %s252 = smul.addr %s248, 2
          %s253 = sadd.s32 %s26, %s252
          %s254 = smul.addr %s253, 128
          %s255 = scalar_lea.hbm %s1, %s254
          %s256 = sshll.u32 %s247, 4
          %s257 = int_to_ptr.vmem [resolvable:$true] %s256
          %262 = dma.hbm_to_vmem [thread:$0]  %s255, 512, %s257, %s244, 256, 128, 8
        $region24: #{tpu_custom_call.1} parent=19 // pred_fallthru
          _
        // Predicated region
        $region25: #{tpu_custom_call.1} parent=19 // pred_check
          %p263 = pneg %p115
        $region26: #{tpu_custom_call.1} parent=19 // pred_check_branch
          %265 = sbr.rel (%p263) target = $region28
        $region27: #{tpu_custom_call.1} parent=19 // pred_region
          %s266 = sand.u32 %s105, 1
          %s267 = sand.u32 %s105, 1
          %s268 = smul.addr %s267, 2
          %s269 = scalar_lea.vmem [#allocation9], %s268
          %s270 = smul.u32 2, %s27
          %s271 = smul.addr %s270, 2
          %s272 = sadd.s32 %s26, %s271
          %s273 = scalar_lea.vmem %s2, %s272
          // Predicated region
          $region29: #{tpu_custom_call.1} parent=27 // pred_check
            _
          $region30: #{tpu_custom_call.1} parent=27 // pred_check_branch
            %275 = sbr.rel (0) target = $region32
          $region31: #{tpu_custom_call.1} parent=27 // pred_region
            // Predicated region
            $region33: #{tpu_custom_call.1} parent=31 // pred_check
              _
            $region34: #{tpu_custom_call.1} parent=31 // pred_check_branch
              %277 = sbr.rel target = $region36
            $region35: #{tpu_custom_call.1} parent=31 // pred_region
              // Predicated region
              $region48: #{tpu_custom_call.1} parent=35 // pred_check
                _
              $region49: #{tpu_custom_call.1} parent=35 // pred_check_branch
                %294 = sbr.rel (0) target = $region51
              $region50: #{tpu_custom_call.1} parent=35 // pred_region
                loop: start=0, step=1, limit=1
                $region52: #{tpu_custom_call.1} parent=50 // loop_pre_header
                  _
                $region53: #{tpu_custom_call.1} parent=50 // loop_header
                  %s297 = sphi 0, %s301
                  %p298 = scmp.ge.s32.totalorder %s297, 1
                  %s302 = sphi %s273, %s273
                  %s303 = sphi %s269, %s269
                $region54: #{tpu_custom_call.1} parent=50 // loop_header_branch
                  %300 = sbr.rel (%p298) target = $region58
                $region55: #{tpu_custom_call.1} parent=50 // loop_body
                  %v304 = vld [vmem:[%s302] sm:$0x1]
                  %305 = vst [vmem:[%s303] sm:$0x1] %v304
                  %v306 = vld [vmem:[%s302 + $0x2] sm:$0x1]
                  %307 = vst [vmem:[%s303 + $0x1] sm:$0x1] %v306
                $region56: #{tpu_custom_call.1} parent=50 // loop_footer
                  %s301 = sadd.s32 1, %s297
                $region57: #{tpu_custom_call.1} parent=50 // loop_footer_branch
                  %296 = sbr.rel target = $region53
                $region58: #{tpu_custom_call.1} parent=50 // loop_exit
                  _
              $region51: #{tpu_custom_call.1} parent=35 // pred_fallthru
                _
            $region36: #{tpu_custom_call.1} parent=31 // pred_fallthru
              _
            // Predicated region
            $region37: #{tpu_custom_call.1} parent=31 // pred_check
              _
            $region38: #{tpu_custom_call.1} parent=31 // pred_check_branch
              %279 = sbr.rel (0) target = $region40
            $region39: #{tpu_custom_call.1} parent=31 // pred_region
              loop: start=0, step=1, limit=1
              $region41: #{tpu_custom_call.1} parent=39 // loop_pre_header
                _
              $region42: #{tpu_custom_call.1} parent=39 // loop_header
                %s282 = sphi 0, %s286
                %p283 = scmp.ge.s32.totalorder %s282, 1
                %s287 = sphi %s273, %s273
                %s288 = sphi %s269, %s269
              $region43: #{tpu_custom_call.1} parent=39 // loop_header_branch
                %285 = sbr.rel (%p283) target = $region47
              $region44: #{tpu_custom_call.1} parent=39 // loop_body
                %v289 = vld [vmem:[%s287] sm:$0x1]
                %290 = vst [vmem:[%s288] sm:$0x1] %v289
                %v291 = vld [vmem:[%s287 + $0x2] sm:$0x1]
                %292 = vst [vmem:[%s288 + $0x1] sm:$0x1] %v291
              $region45: #{tpu_custom_call.1} parent=39 // loop_footer
                %s286 = sadd.s32 1, %s282
              $region46: #{tpu_custom_call.1} parent=39 // loop_footer_branch
                %281 = sbr.rel target = $region42
              $region47: #{tpu_custom_call.1} parent=39 // loop_exit
                _
            $region40: #{tpu_custom_call.1} parent=31 // pred_fallthru
              _
          $region32: #{tpu_custom_call.1} parent=27 // pred_fallthru
            _
          %308 = vnop
        $region28: #{tpu_custom_call.1} parent=19 // pred_fallthru
          _
        // Predicated region
        $region59: #{tpu_custom_call.1} parent=19 // pred_check
          %p309 = pneg %p143
        $region60: #{tpu_custom_call.1} parent=19 // pred_check_branch
          %311 = sbr.rel (%p309) target = $region62
        $region61: #{tpu_custom_call.1} parent=19 // pred_region
          %s312 = sand.u32 %s18, 1
          %s313 = scalar_lea.sflag [#allocation8], %s312
          %s314 = sand.u32 %s133, 1
          %s315 = smul.addr %s314, 32
          %s316 = scalar_lea.vmem [#allocation10], %s315
          %s317 = smul.u32 4, %s27
          %s319 = ssub.s32 512, 512
          %320 = vsyncadd %s313, %s319
          %s321 = smul.addr %s317, 2
          %s322 = sadd.s32 %s26, %s321
          %s323 = smul.addr %s322, 128
          %s324 = scalar_lea.hbm %s3, %s323
          %s325 = sshll.u32 %s316, 4
          %s326 = int_to_ptr.vmem [resolvable:$true] %s325
          %331 = dma.hbm_to_vmem [thread:$0]  %s324, 512, %s326, %s313, 256, 128, 8
        $region62: #{tpu_custom_call.1} parent=19 // pred_fallthru
          _
        // Predicated region
        $region63: #{tpu_custom_call.1} parent=19 // pred_check
          %p332 = pneg %p171
        $region64: #{tpu_custom_call.1} parent=19 // pred_check_branch
          %334 = sbr.rel (%p332) target = $region66
        $region65: #{tpu_custom_call.1} parent=19 // pred_region
          %s335 = sand.u32 %s161, 1
          %s336 = sand.u32 %s161, 1
          %s337 = smul.addr %s336, 2
          %s338 = scalar_lea.vmem [#allocation11], %s337
          %s339 = smul.u32 2, %s27
          %s340 = smul.addr %s339, 2
          %s341 = sadd.s32 %s26, %s340
          %s342 = scalar_lea.vmem %s4, %s341
          // Predicated region
          $region67: #{tpu_custom_call.1} parent=65 // pred_check
            _
          $region68: #{tpu_custom_call.1} parent=65 // pred_check_branch
            %344 = sbr.rel (0) target = $region70
          $region69: #{tpu_custom_call.1} parent=65 // pred_region
            // Predicated region
            $region71: #{tpu_custom_call.1} parent=69 // pred_check
              _
            $region72: #{tpu_custom_call.1} parent=69 // pred_check_branch
              %346 = sbr.rel target = $region74
            $region73: #{tpu_custom_call.1} parent=69 // pred_region
              // Predicated region
              $region86: #{tpu_custom_call.1} parent=73 // pred_check
                _
              $region87: #{tpu_custom_call.1} parent=73 // pred_check_branch
                %363 = sbr.rel (0) target = $region89
              $region88: #{tpu_custom_call.1} parent=73 // pred_region
                loop: start=0, step=1, limit=1
                $region90: #{tpu_custom_call.1} parent=88 // loop_pre_header
                  _
                $region91: #{tpu_custom_call.1} parent=88 // loop_header
                  %s366 = sphi 0, %s370
                  %p367 = scmp.ge.s32.totalorder %s366, 1
                  %s371 = sphi %s342, %s342
                  %s372 = sphi %s338, %s338
                $region92: #{tpu_custom_call.1} parent=88 // loop_header_branch
                  %369 = sbr.rel (%p367) target = $region96
                $region93: #{tpu_custom_call.1} parent=88 // loop_body
                  %v373 = vld [vmem:[%s371] sm:$0x1]
                  %374 = vst [vmem:[%s372] sm:$0x1] %v373
                  %v375 = vld [vmem:[%s371 + $0x2] sm:$0x1]
                  %376 = vst [vmem:[%s372 + $0x1] sm:$0x1] %v375
                $region94: #{tpu_custom_call.1} parent=88 // loop_footer
                  %s370 = sadd.s32 1, %s366
                $region95: #{tpu_custom_call.1} parent=88 // loop_footer_branch
                  %365 = sbr.rel target = $region91
                $region96: #{tpu_custom_call.1} parent=88 // loop_exit
                  _
              $region89: #{tpu_custom_call.1} parent=73 // pred_fallthru
                _
            $region74: #{tpu_custom_call.1} parent=69 // pred_fallthru
              _
            // Predicated region
            $region75: #{tpu_custom_call.1} parent=69 // pred_check
              _
            $region76: #{tpu_custom_call.1} parent=69 // pred_check_branch
              %348 = sbr.rel (0) target = $region78
            $region77: #{tpu_custom_call.1} parent=69 // pred_region
              loop: start=0, step=1, limit=1
              $region79: #{tpu_custom_call.1} parent=77 // loop_pre_header
                _
              $region80: #{tpu_custom_call.1} parent=77 // loop_header
                %s351 = sphi 0, %s355
                %p352 = scmp.ge.s32.totalorder %s351, 1
                %s356 = sphi %s342, %s342
                %s357 = sphi %s338, %s338
              $region81: #{tpu_custom_call.1} parent=77 // loop_header_branch
                %354 = sbr.rel (%p352) target = $region85
              $region82: #{tpu_custom_call.1} parent=77 // loop_body
                %v358 = vld [vmem:[%s356] sm:$0x1]
                %359 = vst [vmem:[%s357] sm:$0x1] %v358
                %v360 = vld [vmem:[%s356 + $0x2] sm:$0x1]
                %361 = vst [vmem:[%s357 + $0x1] sm:$0x1] %v360
              $region83: #{tpu_custom_call.1} parent=77 // loop_footer
                %s355 = sadd.s32 1, %s351
              $region84: #{tpu_custom_call.1} parent=77 // loop_footer_branch
                %350 = sbr.rel target = $region80
              $region85: #{tpu_custom_call.1} parent=77 // loop_exit
                _
            $region78: #{tpu_custom_call.1} parent=69 // pred_fallthru
              _
          $region70: #{tpu_custom_call.1} parent=65 // pred_fallthru
            _
          %377 = vnop
        $region66: #{tpu_custom_call.1} parent=19 // pred_fallthru
          _
      $region20: #{tpu_custom_call.1} parent=5 // pred_fallthru
        _
      %p378 = scmp.le.s32.totalorder 1, %s18
      %p379 = scmp.lt.s32.totalorder %s18, 3
      %p380 = pnand %p378, %p379
      %p381 = pneg %p380
      // Predicated region
      $region97: #{tpu_custom_call.1} parent=5 // pred_check
        _
      $region98: #{tpu_custom_call.1} parent=5 // pred_check_branch
        %383 = sbr.rel (%p380) target = $region100
      $region99: #{tpu_custom_call.1} parent=5 // pred_region
        %s384 = ssub.s32 %s18, 1
        // Predicated region
        $region101: #{tpu_custom_call.1} parent=99 // pred_check
          %p385 = pneg %p65
        $region102: #{tpu_custom_call.1} parent=99 // pred_check_branch
          %387 = sbr.rel (%p385) target = $region104
        $region103: #{tpu_custom_call.1} parent=99 // pred_region
          %388 = dma.done [#allocation5], 128
        $region104: #{tpu_custom_call.1} parent=99 // pred_fallthru
          _
        %s389 = sand.u32 %s23, 1
        %s390 = scalar_lea.sflag [#allocation8], %s389
        %s391 = sand.u32 %s80, 1
        %s392 = smul.addr %s391, 32
        %s393 = scalar_lea.vmem [#allocation7], %s392
        // Predicated region
        $region105: #{tpu_custom_call.1} parent=99 // pred_check
          %p394 = pneg %p93
        $region106: #{tpu_custom_call.1} parent=99 // pred_check_branch
          %396 = sbr.rel (%p394) target = $region108
        $region107: #{tpu_custom_call.1} parent=99 // pred_region
          %397 = dma.done %s390, 512
        $region108: #{tpu_custom_call.1} parent=99 // pred_fallthru
          _
        %s398 = sand.u32 %s108, 1
        %s399 = sand.u32 %s108, 1
        %s400 = smul.addr %s399, 2
        %s401 = scalar_lea.vmem [#allocation9], %s400
        // Predicated region
        $region109: #{tpu_custom_call.1} parent=99 // pred_check
          %p402 = pneg %p121
        $region110: #{tpu_custom_call.1} parent=99 // pred_check_branch
          %404 = sbr.rel (%p402) target = $region112
        $region111: #{tpu_custom_call.1} parent=99 // pred_region
          _
        $region112: #{tpu_custom_call.1} parent=99 // pred_fallthru
          _
        %s405 = sand.u32 %s23, 1
        %s406 = scalar_lea.sflag [#allocation8], %s405
        %s407 = sand.u32 %s136, 1
        %s408 = smul.addr %s407, 32
        %s409 = scalar_lea.vmem [#allocation10], %s408
        // Predicated region
        $region113: #{tpu_custom_call.1} parent=99 // pred_check
          %p410 = pneg %p149
        $region114: #{tpu_custom_call.1} parent=99 // pred_check_branch
          %412 = sbr.rel (%p410) target = $region116
        $region115: #{tpu_custom_call.1} parent=99 // pred_region
          %413 = dma.done %s406, 512
        $region116: #{tpu_custom_call.1} parent=99 // pred_fallthru
          _
        %s414 = sand.u32 %s164, 1
        %s415 = sand.u32 %s164, 1
        %s416 = smul.addr %s415, 2
        %s417 = scalar_lea.vmem [#allocation11], %s416
        // Predicated region
        $region117: #{tpu_custom_call.1} parent=99 // pred_check
          %p418 = pneg %p177
        $region118: #{tpu_custom_call.1} parent=99 // pred_check_branch
          %420 = sbr.rel (%p418) target = $region120
        $region119: #{tpu_custom_call.1} parent=99 // pred_region
          _
        $region120: #{tpu_custom_call.1} parent=99 // pred_fallthru
          _
        %p421 = pneg %p65
        %p422 = pneg %p62
        %s423 = sand.u32 %s23, 1
        %s424 = scalar_lea.sflag [#allocation8], %s423
        %s425 = sand.u32 %s80, 1
        %s426 = smul.addr %s425, 32
        %s427 = scalar_lea.vmem [#allocation7], %s426
        %p428 = pneg %p93
        %p429 = pneg %p90
        %s430 = sand.u32 %s108, 1
        %s431 = sand.u32 %s108, 1
        %s432 = smul.addr %s431, 2
        %s433 = scalar_lea.vmem [#allocation9], %s432
        %p434 = pneg %p121
        %p435 = pneg %p118
        %s436 = sand.u32 %s23, 1
        %s437 = scalar_lea.sflag [#allocation8], %s436
        %s438 = sand.u32 %s136, 1
        %s439 = smul.addr %s438, 32
        %s440 = scalar_lea.vmem [#allocation10], %s439
        %p441 = pneg %p149
        %p442 = pneg %p146
        %s443 = sand.u32 %s164, 1
        %s444 = sand.u32 %s164, 1
        %s445 = smul.addr %s444, 2
        %s446 = scalar_lea.vmem [#allocation11], %s445
        %p447 = pneg %p177
        %p448 = pneg %p174
        %p449 = pneg %p205
        %p450 = pneg %p202
        %s451 = sand.u32 %s192, 1
        %s452 = scalar_lea.sflag [#allocation6], %s451
        %s453 = sand.u32 %s192, 1
        %s454 = smul.addr %s453, 4
        %s455 = scalar_lea.vmem [#allocation12], %s454
        %s456 = smul.u32 2, %s30
        %s457 = smul.u32 4, %s30
        %s458 = smul.u32 2, %s30
        %s459 = smul.u32 4, %s30
        %s460 = smul.u32 2, %s30
        %p462 = scmp.eq.s32.totalorder %s30, 0
        // Predicated region
        $region121: #{tpu_custom_call.1} parent=99 // pred_check
          %p463 = pneg %p462
        $region122: #{tpu_custom_call.1} parent=99 // pred_check_branch
          %465 = sbr.rel (%p463) target = $region124
        $region123: #{tpu_custom_call.1} parent=99 // pred_region
          %466 = vst [vmem:[#allocation2] sm:$0xff] 0.0
          %467 = vst [vmem:[#allocation3] sm:$0xff] 0.0
        $region124: #{tpu_custom_call.1} parent=99 // pred_fallthru
          _
        %v468 = vld [vmem:[%s401] sm:$0x1]
        %v469 = vld [vmem:[%s401 + $0x1] sm:$0x1]
        %v470 = vld [vmem:[%s417] sm:$0x1]
        %v471 = vld [vmem:[%s417 + $0x1] sm:$0x1]
        %v472 = vld [vmem:[#allocation4] sm:$0xf]
        %v473 = vld [vmem:[%s393] sm:$0xff]
        %v474 = vld [vmem:[%s393 + $0x8] sm:$0xff]
        %v475 = vand.u32 %v473, 15
        %v476 = vand.u32 %v474, 15
        %v477 = vshra.s32 %v473, 4
        %v478 = vshra.s32 %v474, 4
        %v479 = vand.u32 %v477, 15
        %v480 = vand.u32 %v478, 15
        %v481 = vshra.s32 %v473, 8
        %v482 = vshra.s32 %v474, 8
        %v483 = vand.u32 %v481, 15
        %v484 = vand.u32 %v482, 15
        %v485 = vshra.s32 %v473, 12
        %v486 = vshra.s32 %v474, 12
        %v487 = vand.u32 %v485, 15
        %v488 = vand.u32 %v486, 15
        %v489 = vshra.s32 %v473, 16
        %v490 = vshra.s32 %v474, 16
        %v491 = vand.u32 %v489, 15
        %v492 = vand.u32 %v490, 15
        %v493 = vshra.s32 %v473, 20
        %v494 = vshra.s32 %v474, 20
        %v495 = vand.u32 %v493, 15
        %v496 = vand.u32 %v494, 15
        %v497 = vshra.s32 %v473, 24
        %v498 = vshra.s32 %v474, 24
        %v499 = vand.u32 %v497, 15
        %v500 = vand.u32 %v498, 15
        %v501 = vshra.s32 %v473, 28
        %v502 = vshra.s32 %v474, 28
        %v503 = vand.u32 %v501, 15
        %v504 = vand.u32 %v502, 15
        %v505 = vcvt.s32.f32 %v475
        %v506 = vcvt.s32.f32 %v476
        %v507 = vcvt.s32.f32 %v479
        %v508 = vcvt.s32.f32 %v480
        %v509 = vcvt.s32.f32 %v483
        %v510 = vcvt.s32.f32 %v484
        %v511 = vcvt.s32.f32 %v487
        %v512 = vcvt.s32.f32 %v488
        %v513 = vcvt.s32.f32 %v491
        %v514 = vcvt.s32.f32 %v492
        %v515 = vcvt.s32.f32 %v495
        %v516 = vcvt.s32.f32 %v496
        %v517 = vcvt.s32.f32 %v499
        %v518 = vcvt.s32.f32 %v500
        %v519 = vcvt.s32.f32 %v503
        %v520 = vcvt.s32.f32 %v504
        %v521 = vpack.c.bf16 %v506, %v505
        %v522 = vpack.c.bf16 %v508, %v507
        %v523 = vpack.c.bf16 %v510, %v509
        %v524 = vpack.c.bf16 %v512, %v511
        %v525 = vpack.c.bf16 %v514, %v513
        %v526 = vpack.c.bf16 %v516, %v515
        %v527 = vpack.c.bf16 %v518, %v517
        %v528 = vpack.c.bf16 %v520, %v519
        %v530 = vpack.i.b16 %v468, %v468
        %v532 = vlaneseq
        %v533 = vshrl.u32 %v532, 7
        %v534 = vsub.s32 0, %v533
        %v535 = vrot.slane %v530, %v534
        %v536 = vmul.bf16 %v521, %v535
        %v537 = vmul.bf16 %v522, %v535
        %v538 = vmul.bf16 %v523, %v535
        %v539 = vmul.bf16 %v524, %v535
        %v540 = vmul.bf16 %v525, %v535
        %v541 = vmul.bf16 %v526, %v535
        %v542 = vmul.bf16 %v527, %v535
        %v543 = vmul.bf16 %v528, %v535
        %v544 = vshrl.u32 %v468, 16
        %v545 = vpack.i.b16 %v544, %v544
        %v547 = vlaneseq
        %v548 = vshrl.u32 %v547, 7
        %v549 = vsub.s32 0, %v548
        %v550 = vrot.slane %v545, %v549
        %v551 = vadd.bf16 %v536, %v550
        %v552 = vadd.bf16 %v537, %v550
        %v553 = vadd.bf16 %v538, %v550
        %v554 = vadd.bf16 %v539, %v550
        %v555 = vadd.bf16 %v540, %v550
        %v556 = vadd.bf16 %v541, %v550
        %v557 = vadd.bf16 %v542, %v550
        %v558 = vadd.bf16 %v543, %v550
        %v559 = vld [vmem:[#allocation2] sm:$0xff]
        %560 = vmatprep.subr.bf16.mxu0 0
        %561 = vmatpush1.bf16.msra.mxu0 %v551
        %562 = vmatprep.subr.bf16.mxu0 0
        %563 = vmatpush1.bf16.msra.mxu0 %v552
        %564 = vmatprep.subr.bf16.mxu0 0
        %565 = vmatpush1.bf16.msra.mxu0 %v553
        %566 = vmatprep.subr.bf16.mxu0 0
        %567 = vmatpush1.bf16.msra.mxu0 %v554
        %568 = vmatprep.subr.bf16.mxu0 0
        %569 = vmatpush1.bf16.msra.mxu0 %v555
        %570 = vmatprep.subr.bf16.mxu0 0
        %571 = vmatpush1.bf16.msra.mxu0 %v556
        %572 = vmatprep.subr.bf16.mxu0 0
        %573 = vmatpush1.bf16.msra.mxu0 %v557
        %574 = vmatprep.subr.bf16.mxu0 0
        %575 = vmatpush1.bf16.msra.mxu0 %v558
        %576 = vmatprep.subr.bf16.mxu0 0
        %577 = vmatpush1.bf16.msra.mxu0 0
        %578 = vmatprep.subr.bf16.mxu0 0
        %579 = vmatpush1.bf16.msra.mxu0 0
        %580 = vmatprep.subr.bf16.mxu0 0
        %581 = vmatpush1.bf16.msra.mxu0 0
        %582 = vmatprep.subr.bf16.mxu0 0
        %583 = vmatpush1.bf16.msra.mxu0 0
        %584 = vmatprep.subr.bf16.mxu0 0
        %585 = vmatpush1.bf16.msra.mxu0 0
        %586 = vmatprep.subr.bf16.mxu0 0
        %587 = vmatpush1.bf16.msra.mxu0 0
        %588 = vmatprep.subr.bf16.mxu0 0
        %589 = vmatpush1.bf16.msra.mxu0 0
        %590 = vmatprep.subr.bf16.mxu0 0
        %591 = vmatpush1.bf16.msra.mxu0 0
        %592 = vmatprep.mubr.bf16.mxu0 0
        %593 = vmatmul.mubr.bf16.gmra.mrb[0].mxu0 %v472
        %v594 = vpop.f32.mrb[0].mxu0
        %v595 = vadd.f32 0.0, %v594
        %v596 = vpop.f32.mrb[0].mxu0
        %v597 = vpop.f32.mrb[0].mxu0
        %v598 = vpop.f32.mrb[0].mxu0
        %599 = vdwg.mxu0
        %v600 = vadd.f32 %v559, %v595
        %601 = vst [vmem:[#allocation2] sm:$0xff] %v600
        %v602 = vld [vmem:[%s409] sm:$0xff]
        %v603 = vld [vmem:[%s409 + $0x8] sm:$0xff]
        %v604 = vand.u32 %v602, 15
        %v605 = vand.u32 %v603, 15
        %v606 = vshra.s32 %v602, 4
        %v607 = vshra.s32 %v603, 4
        %v608 = vand.u32 %v606, 15
        %v609 = vand.u32 %v607, 15
        %v610 = vshra.s32 %v602, 8
        %v611 = vshra.s32 %v603, 8
        %v612 = vand.u32 %v610, 15
        %v613 = vand.u32 %v611, 15
        %v614 = vshra.s32 %v602, 12
        %v615 = vshra.s32 %v603, 12
        %v616 = vand.u32 %v614, 15
        %v617 = vand.u32 %v615, 15
        %v618 = vshra.s32 %v602, 16
        %v619 = vshra.s32 %v603, 16
        %v620 = vand.u32 %v618, 15
        %v621 = vand.u32 %v619, 15
        %v622 = vshra.s32 %v602, 20
        %v623 = vshra.s32 %v603, 20
        %v624 = vand.u32 %v622, 15
        %v625 = vand.u32 %v623, 15
        %v626 = vshra.s32 %v602, 24
        %v627 = vshra.s32 %v603, 24
        %v628 = vand.u32 %v626, 15
        %v629 = vand.u32 %v627, 15
        %v630 = vshra.s32 %v602, 28
        %v631 = vshra.s32 %v603, 28
        %v632 = vand.u32 %v630, 15
        %v633 = vand.u32 %v631, 15
        %v634 = vcvt.s32.f32 %v604
        %v635 = vcvt.s32.f32 %v605
        %v636 = vcvt.s32.f32 %v608
        %v637 = vcvt.s32.f32 %v609
        %v638 = vcvt.s32.f32 %v612
        %v639 = vcvt.s32.f32 %v613
        %v640 = vcvt.s32.f32 %v616
        %v641 = vcvt.s32.f32 %v617
        %v642 = vcvt.s32.f32 %v620
        %v643 = vcvt.s32.f32 %v621
        %v644 = vcvt.s32.f32 %v624
        %v645 = vcvt.s32.f32 %v625
        %v646 = vcvt.s32.f32 %v628
        %v647 = vcvt.s32.f32 %v629
        %v648 = vcvt.s32.f32 %v632
        %v649 = vcvt.s32.f32 %v633
        %v650 = vpack.c.bf16 %v635, %v634
        %v651 = vpack.c.bf16 %v637, %v636
        %v652 = vpack.c.bf16 %v639, %v638
        %v653 = vpack.c.bf16 %v641, %v640
        %v654 = vpack.c.bf16 %v643, %v642
        %v655 = vpack.c.bf16 %v645, %v644
        %v656 = vpack.c.bf16 %v647, %v646
        %v657 = vpack.c.bf16 %v649, %v648
        %v659 = vpack.i.b16 %v470, %v470
        %v661 = vlaneseq
        %v662 = vshrl.u32 %v661, 7
        %v663 = vsub.s32 0, %v662
        %v664 = vrot.slane %v659, %v663
        %v665 = vmul.bf16 %v650, %v664
        %v666 = vmul.bf16 %v651, %v664
        %v667 = vmul.bf16 %v652, %v664
        %v668 = vmul.bf16 %v653, %v664
        %v669 = vmul.bf16 %v654, %v664
        %v670 = vmul.bf16 %v655, %v664
        %v671 = vmul.bf16 %v656, %v664
        %v672 = vmul.bf16 %v657, %v664
        %v673 = vshrl.u32 %v470, 16
        %v674 = vpack.i.b16 %v673, %v673
        %v676 = vlaneseq
        %v677 = vshrl.u32 %v676, 7
        %v678 = vsub.s32 0, %v677
        %v679 = vrot.slane %v674, %v678
        %v680 = vadd.bf16 %v665, %v679
        %v681 = vadd.bf16 %v666, %v679
        %v682 = vadd.bf16 %v667, %v679
        %v683 = vadd.bf16 %v668, %v679
        %v684 = vadd.bf16 %v669, %v679
        %v685 = vadd.bf16 %v670, %v679
        %v686 = vadd.bf16 %v671, %v679
        %v687 = vadd.bf16 %v672, %v679
        %v688 = vld [vmem:[#allocation3] sm:$0xff]
        %689 = vmatprep.subr.bf16.mxu0 0
        %690 = vmatpush1.bf16.msra.mxu0 %v680
        %691 = vmatprep.subr.bf16.mxu0 0
        %692 = vmatpush1.bf16.msra.mxu0 %v681
        %693 = vmatprep.subr.bf16.mxu0 0
        %694 = vmatpush1.bf16.msra.mxu0 %v682
        %695 = vmatprep.subr.bf16.mxu0 0
        %696 = vmatpush1.bf16.msra.mxu0 %v683
        %697 = vmatprep.subr.bf16.mxu0 0
        %698 = vmatpush1.bf16.msra.mxu0 %v684
        %699 = vmatprep.subr.bf16.mxu0 0
        %700 = vmatpush1.bf16.msra.mxu0 %v685
        %701 = vmatprep.subr.bf16.mxu0 0
        %702 = vmatpush1.bf16.msra.mxu0 %v686
        %703 = vmatprep.subr.bf16.mxu0 0
        %704 = vmatpush1.bf16.msra.mxu0 %v687
        %705 = vmatprep.subr.bf16.mxu0 0
        %706 = vmatpush1.bf16.msra.mxu0 0
        %707 = vmatprep.subr.bf16.mxu0 0
        %708 = vmatpush1.bf16.msra.mxu0 0
        %709 = vmatprep.subr.bf16.mxu0 0
        %710 = vmatpush1.bf16.msra.mxu0 0
        %711 = vmatprep.subr.bf16.mxu0 0
        %712 = vmatpush1.bf16.msra.mxu0 0
        %713 = vmatprep.subr.bf16.mxu0 0
        %714 = vmatpush1.bf16.msra.mxu0 0
        %715 = vmatprep.subr.bf16.mxu0 0
        %716 = vmatpush1.bf16.msra.mxu0 0
        %717 = vmatprep.subr.bf16.mxu0 0
        %718 = vmatpush1.bf16.msra.mxu0 0
        %719 = vmatprep.subr.bf16.mxu0 0
        %720 = vmatpush1.bf16.msra.mxu0 0
        %721 = vmatprep.mubr.bf16.mxu0 0
        %722 = vmatmul.mubr.bf16.gmra.mrb[0].mxu0 %v472
        %v723 = vpop.f32.mrb[0].mxu0
        %v724 = vadd.f32 0.0, %v723
        %v725 = vpop.f32.mrb[0].mxu0
        %v726 = vpop.f32.mrb[0].mxu0
        %v727 = vpop.f32.mrb[0].mxu0
        %728 = vdwg.mxu0
        %v729 = vadd.f32 %v688, %v724
        %730 = vst [vmem:[#allocation3] sm:$0xff] %v729
        %v731 = vld [vmem:[#allocation4 + $0x4] sm:$0xf]
        %v732 = vld [vmem:[%s393 + $0x10] sm:$0xff]
        %v733 = vld [vmem:[%s393 + $0x18] sm:$0xff]
        %v734 = vand.u32 %v732, 15
        %v735 = vand.u32 %v733, 15
        %v736 = vshra.s32 %v732, 4
        %v737 = vshra.s32 %v733, 4
        %v738 = vand.u32 %v736, 15
        %v739 = vand.u32 %v737, 15
        %v740 = vshra.s32 %v732, 8
        %v741 = vshra.s32 %v733, 8
        %v742 = vand.u32 %v740, 15
        %v743 = vand.u32 %v741, 15
        %v744 = vshra.s32 %v732, 12
        %v745 = vshra.s32 %v733, 12
        %v746 = vand.u32 %v744, 15
        %v747 = vand.u32 %v745, 15
        %v748 = vshra.s32 %v732, 16
        %v749 = vshra.s32 %v733, 16
        %v750 = vand.u32 %v748, 15
        %v751 = vand.u32 %v749, 15
        %v752 = vshra.s32 %v732, 20
        %v753 = vshra.s32 %v733, 20
        %v754 = vand.u32 %v752, 15
        %v755 = vand.u32 %v753, 15
        %v756 = vshra.s32 %v732, 24
        %v757 = vshra.s32 %v733, 24
        %v758 = vand.u32 %v756, 15
        %v759 = vand.u32 %v757, 15
        %v760 = vshra.s32 %v732, 28
        %v761 = vshra.s32 %v733, 28
        %v762 = vand.u32 %v760, 15
        %v763 = vand.u32 %v761, 15
        %v764 = vcvt.s32.f32 %v734
        %v765 = vcvt.s32.f32 %v735
        %v766 = vcvt.s32.f32 %v738
        %v767 = vcvt.s32.f32 %v739
        %v768 = vcvt.s32.f32 %v742
        %v769 = vcvt.s32.f32 %v743
        %v770 = vcvt.s32.f32 %v746
        %v771 = vcvt.s32.f32 %v747
        %v772 = vcvt.s32.f32 %v750
        %v773 = vcvt.s32.f32 %v751
        %v774 = vcvt.s32.f32 %v754
        %v775 = vcvt.s32.f32 %v755
        %v776 = vcvt.s32.f32 %v758
        %v777 = vcvt.s32.f32 %v759
        %v778 = vcvt.s32.f32 %v762
        %v779 = vcvt.s32.f32 %v763
        %v780 = vpack.c.bf16 %v765, %v764
        %v781 = vpack.c.bf16 %v767, %v766
        %v782 = vpack.c.bf16 %v769, %v768
        %v783 = vpack.c.bf16 %v771, %v770
        %v784 = vpack.c.bf16 %v773, %v772
        %v785 = vpack.c.bf16 %v775, %v774
        %v786 = vpack.c.bf16 %v777, %v776
        %v787 = vpack.c.bf16 %v779, %v778
        %v789 = vpack.i.b16 %v469, %v469
        %v791 = vlaneseq
        %v792 = vshrl.u32 %v791, 7
        %v793 = vsub.s32 0, %v792
        %v794 = vrot.slane %v789, %v793
        %v795 = vmul.bf16 %v780, %v794
        %v796 = vmul.bf16 %v781, %v794
        %v797 = vmul.bf16 %v782, %v794
        %v798 = vmul.bf16 %v783, %v794
        %v799 = vmul.bf16 %v784, %v794
        %v800 = vmul.bf16 %v785, %v794
        %v801 = vmul.bf16 %v786, %v794
        %v802 = vmul.bf16 %v787, %v794
        %v803 = vshrl.u32 %v469, 16
        %v804 = vpack.i.b16 %v803, %v803
        %v806 = vlaneseq
        %v807 = vshrl.u32 %v806, 7
        %v808 = vsub.s32 0, %v807
        %v809 = vrot.slane %v804, %v808
        %v810 = vadd.bf16 %v795, %v809
        %v811 = vadd.bf16 %v796, %v809
        %v812 = vadd.bf16 %v797, %v809
        %v813 = vadd.bf16 %v798, %v809
        %v814 = vadd.bf16 %v799, %v809
        %v815 = vadd.bf16 %v800, %v809
        %v816 = vadd.bf16 %v801, %v809
        %v817 = vadd.bf16 %v802, %v809
        %v818 = vld [vmem:[#allocation2] sm:$0xff]
        %819 = vmatprep.subr.bf16.mxu0 0
        %820 = vmatpush1.bf16.msra.mxu0 %v810
        %821 = vmatprep.subr.bf16.mxu0 0
        %822 = vmatpush1.bf16.msra.mxu0 %v811
        %823 = vmatprep.subr.bf16.mxu0 0
        %824 = vmatpush1.bf16.msra.mxu0 %v812
        %825 = vmatprep.subr.bf16.mxu0 0
        %826 = vmatpush1.bf16.msra.mxu0 %v813
        %827 = vmatprep.subr.bf16.mxu0 0
        %828 = vmatpush1.bf16.msra.mxu0 %v814
        %829 = vmatprep.subr.bf16.mxu0 0
        %830 = vmatpush1.bf16.msra.mxu0 %v815
        %831 = vmatprep.subr.bf16.mxu0 0
        %832 = vmatpush1.bf16.msra.mxu0 %v816
        %833 = vmatprep.subr.bf16.mxu0 0
        %834 = vmatpush1.bf16.msra.mxu0 %v817
        %835 = vmatprep.subr.bf16.mxu0 0
        %836 = vmatpush1.bf16.msra.mxu0 0
        %837 = vmatprep.subr.bf16.mxu0 0
        %838 = vmatpush1.bf16.msra.mxu0 0
        %839 = vmatprep.subr.bf16.mxu0 0
        %840 = vmatpush1.bf16.msra.mxu0 0
        %841 = vmatprep.subr.bf16.mxu0 0
        %842 = vmatpush1.bf16.msra.mxu0 0
        %843 = vmatprep.subr.bf16.mxu0 0
        %844 = vmatpush1.bf16.msra.mxu0 0
        %845 = vmatprep.subr.bf16.mxu0 0
        %846 = vmatpush1.bf16.msra.mxu0 0
        %847 = vmatprep.subr.bf16.mxu0 0
        %848 = vmatpush1.bf16.msra.mxu0 0
        %849 = vmatprep.subr.bf16.mxu0 0
        %850 = vmatpush1.bf16.msra.mxu0 0
        %851 = vmatprep.mubr.bf16.mxu0 0
        %852 = vmatmul.mubr.bf16.gmra.mrb[0].mxu0 %v731
        %v853 = vpop.f32.mrb[0].mxu0
        %v854 = vadd.f32 0.0, %v853
        %v855 = vpop.f32.mrb[0].mxu0
        %v856 = vpop.f32.mrb[0].mxu0
        %v857 = vpop.f32.mrb[0].mxu0
        %858 = vdwg.mxu0
        %v859 = vadd.f32 %v818, %v854
        %860 = vst [vmem:[#allocation2] sm:$0xff] %v859
        %v861 = vld [vmem:[%s409 + $0x10] sm:$0xff]
        %v862 = vld [vmem:[%s409 + $0x18] sm:$0xff]
        %v863 = vand.u32 %v861, 15
        %v864 = vand.u32 %v862, 15
        %v865 = vshra.s32 %v861, 4
        %v866 = vshra.s32 %v862, 4
        %v867 = vand.u32 %v865, 15
        %v868 = vand.u32 %v866, 15
        %v869 = vshra.s32 %v861, 8
        %v870 = vshra.s32 %v862, 8
        %v871 = vand.u32 %v869, 15
        %v872 = vand.u32 %v870, 15
        %v873 = vshra.s32 %v861, 12
        %v874 = vshra.s32 %v862, 12
        %v875 = vand.u32 %v873, 15
        %v876 = vand.u32 %v874, 15
        %v877 = vshra.s32 %v861, 16
        %v878 = vshra.s32 %v862, 16
        %v879 = vand.u32 %v877, 15
        %v880 = vand.u32 %v878, 15
        %v881 = vshra.s32 %v861, 20
        %v882 = vshra.s32 %v862, 20
        %v883 = vand.u32 %v881, 15
        %v884 = vand.u32 %v882, 15
        %v885 = vshra.s32 %v861, 24
        %v886 = vshra.s32 %v862, 24
        %v887 = vand.u32 %v885, 15
        %v888 = vand.u32 %v886, 15
        %v889 = vshra.s32 %v861, 28
        %v890 = vshra.s32 %v862, 28
        %v891 = vand.u32 %v889, 15
        %v892 = vand.u32 %v890, 15
        %v893 = vcvt.s32.f32 %v863
        %v894 = vcvt.s32.f32 %v864
        %v895 = vcvt.s32.f32 %v867
        %v896 = vcvt.s32.f32 %v868
        %v897 = vcvt.s32.f32 %v871
        %v898 = vcvt.s32.f32 %v872
        %v899 = vcvt.s32.f32 %v875
        %v900 = vcvt.s32.f32 %v876
        %v901 = vcvt.s32.f32 %v879
        %v902 = vcvt.s32.f32 %v880
        %v903 = vcvt.s32.f32 %v883
        %v904 = vcvt.s32.f32 %v884
        %v905 = vcvt.s32.f32 %v887
        %v906 = vcvt.s32.f32 %v888
        %v907 = vcvt.s32.f32 %v891
        %v908 = vcvt.s32.f32 %v892
        %v909 = vpack.c.bf16 %v894, %v893
        %v910 = vpack.c.bf16 %v896, %v895
        %v911 = vpack.c.bf16 %v898, %v897
        %v912 = vpack.c.bf16 %v900, %v899
        %v913 = vpack.c.bf16 %v902, %v901
        %v914 = vpack.c.bf16 %v904, %v903
        %v915 = vpack.c.bf16 %v906, %v905
        %v916 = vpack.c.bf16 %v908, %v907
        %v918 = vpack.i.b16 %v471, %v471
        %v920 = vlaneseq
        %v921 = vshrl.u32 %v920, 7
        %v922 = vsub.s32 0, %v921
        %v923 = vrot.slane %v918, %v922
        %v924 = vmul.bf16 %v909, %v923
        %v925 = vmul.bf16 %v910, %v923
        %v926 = vmul.bf16 %v911, %v923
        %v927 = vmul.bf16 %v912, %v923
        %v928 = vmul.bf16 %v913, %v923
        %v929 = vmul.bf16 %v914, %v923
        %v930 = vmul.bf16 %v915, %v923
        %v931 = vmul.bf16 %v916, %v923
        %v932 = vshrl.u32 %v471, 16
        %v933 = vpack.i.b16 %v932, %v932
        %v935 = vlaneseq
        %v936 = vshrl.u32 %v935, 7
        %v937 = vsub.s32 0, %v936
        %v938 = vrot.slane %v933, %v937
        %v939 = vadd.bf16 %v924, %v938
        %v940 = vadd.bf16 %v925, %v938
        %v941 = vadd.bf16 %v926, %v938
        %v942 = vadd.bf16 %v927, %v938
        %v943 = vadd.bf16 %v928, %v938
        %v944 = vadd.bf16 %v929, %v938
        %v945 = vadd.bf16 %v930, %v938
        %v946 = vadd.bf16 %v931, %v938
        %v947 = vld [vmem:[#allocation3] sm:$0xff]
        %948 = vmatprep.subr.bf16.mxu0 0
        %949 = vmatpush1.bf16.msra.mxu0 %v939
        %950 = vmatprep.subr.bf16.mxu0 0
        %951 = vmatpush1.bf16.msra.mxu0 %v940
        %952 = vmatprep.subr.bf16.mxu0 0
        %953 = vmatpush1.bf16.msra.mxu0 %v941
        %954 = vmatprep.subr.bf16.mxu0 0
        %955 = vmatpush1.bf16.msra.mxu0 %v942
        %956 = vmatprep.subr.bf16.mxu0 0
        %957 = vmatpush1.bf16.msra.mxu0 %v943
        %958 = vmatprep.subr.bf16.mxu0 0
        %959 = vmatpush1.bf16.msra.mxu0 %v944
        %960 = vmatprep.subr.bf16.mxu0 0
        %961 = vmatpush1.bf16.msra.mxu0 %v945
        %962 = vmatprep.subr.bf16.mxu0 0
        %963 = vmatpush1.bf16.msra.mxu0 %v946
        %964 = vmatprep.subr.bf16.mxu0 0
        %965 = vmatpush1.bf16.msra.mxu0 0
        %966 = vmatprep.subr.bf16.mxu0 0
        %967 = vmatpush1.bf16.msra.mxu0 0
        %968 = vmatprep.subr.bf16.mxu0 0
        %969 = vmatpush1.bf16.msra.mxu0 0
        %970 = vmatprep.subr.bf16.mxu0 0
        %971 = vmatpush1.bf16.msra.mxu0 0
        %972 = vmatprep.subr.bf16.mxu0 0
        %973 = vmatpush1.bf16.msra.mxu0 0
        %974 = vmatprep.subr.bf16.mxu0 0
        %975 = vmatpush1.bf16.msra.mxu0 0
        %976 = vmatprep.subr.bf16.mxu0 0
        %977 = vmatpush1.bf16.msra.mxu0 0
        %978 = vmatprep.subr.bf16.mxu0 0
        %979 = vmatpush1.bf16.msra.mxu0 0
        %980 = vmatprep.mubr.bf16.mxu0 0
        %981 = vmatmul.mubr.bf16.gmra.mrb[0].mxu0 %v731
        %v982 = vpop.f32.mrb[0].mxu0
        %v983 = vadd.f32 0.0, %v982
        %v984 = vpop.f32.mrb[0].mxu0
        %v985 = vpop.f32.mrb[0].mxu0
        %v986 = vpop.f32.mrb[0].mxu0
        %987 = vdwg.mxu0
        %v988 = vadd.f32 %v947, %v983
        %989 = vst [vmem:[#allocation3] sm:$0xff] %v988
        // Predicated region
        $region125: #{tpu_custom_call.1} parent=99 // pred_check
          %p990 = pneg %p462
        $region126: #{tpu_custom_call.1} parent=99 // pred_check_branch
          %992 = sbr.rel (%p990) target = $region128
        $region127: #{tpu_custom_call.1} parent=99 // pred_region
          %v993 = vld [vmem:[#allocation2] sm:$0xff]
          %v994 = vxor.u32 %v993, 2147483648
          %v995 = vmul.f32 %v994, 1.442695
          %v996 = vpow.pop %v995
          %v997 = vadd.f32 %v996, 1.0
          %v998 = vrcp.pop %v997
          %v999 = vmul.f32 1.0, %v998
          %v1000 = vmul.f32 %v993, %v999
          %v1001 = vld [vmem:[#allocation3] sm:$0xff]
          %v1002 = vmul.f32 %v1000, %v1001
          %v1003 = vpack.c.bf16 %v1002, %v1002
          %1004 = vst [vmem:[%s455] sm:$0xf] %v1003
        $region128: #{tpu_custom_call.1} parent=99 // pred_fallthru
          _
        %s1005 = sand.u32 %s192, 1
        %s1006 = scalar_lea.sflag [#allocation6], %s1005
        %s1007 = sand.u32 %s192, 1
        %s1008 = smul.addr %s1007, 4
        %s1009 = scalar_lea.vmem [#allocation12], %s1008
        // Predicated region
        $region129: #{tpu_custom_call.1} parent=99 // pred_check
          %p1010 = pneg %p202
        $region130: #{tpu_custom_call.1} parent=99 // pred_check_branch
          %1012 = sbr.rel (%p1010) target = $region132
        $region131: #{tpu_custom_call.1} parent=99 // pred_region
          %s1014 = ssub.s32 64, 64
          %1015 = vsyncadd %s1006, %s1014
          %s1016 = smul.addr %s28, 2
          %s1017 = sadd.s32 %s29, %s1016
          %s1018 = smul.addr %s1017, 64
          %s1019 = scalar_lea.hbm %s5, %s1018
          %s1021 = sshll.u32 %s1009, 4
          %s1022 = int_to_ptr.vmem [resolvable:$true] %s1021
          %1024 = dma.vmem_to_hbm [thread:$0]  %s1022, 64, %s1019, %s1006
        $region132: #{tpu_custom_call.1} parent=99 // pred_fallthru
          _
      $region100: #{tpu_custom_call.1} parent=5 // pred_fallthru
        _
      %p1025 = scmp.le.s32.totalorder 2, %s18
      // Predicated region
      $region133: #{tpu_custom_call.1} parent=5 // pred_check
        %p1026 = pneg %p1025
      $region134: #{tpu_custom_call.1} parent=5 // pred_check_branch
        %1028 = sbr.rel (%p1026) target = $region136
      $region135: #{tpu_custom_call.1} parent=5 // pred_region
        %s1029 = ssub.s32 %s18, 2
        // Predicated region
        $region137: #{tpu_custom_call.1} parent=135 // pred_check
          %p1030 = pneg %p208
        $region138: #{tpu_custom_call.1} parent=135 // pred_check_branch
          %1032 = sbr.rel (%p1030) target = $region140
        $region139: #{tpu_custom_call.1} parent=135 // pred_region
          %s1033 = sand.u32 %s193, 1
          %s1034 = scalar_lea.sflag [#allocation6], %s1033
          %s1035 = sand.u32 %s193, 1
          %s1036 = smul.addr %s1035, 4
          %s1037 = scalar_lea.vmem [#allocation12], %s1036
          %1038 = dma.done %s1034, 64
        $region140: #{tpu_custom_call.1} parent=135 // pred_fallthru
          _
      $region136: #{tpu_custom_call.1} parent=5 // pred_fallthru
        _
    $region6: #{tpu_custom_call.1} parent=1 // loop_footer
      %s22 = sadd.s32 1, %s18
    $region7: #{tpu_custom_call.1} parent=1 // loop_footer_branch
      %17 = sbr.rel target = $region3
    $region8: #{tpu_custom_call.1} parent=1 // loop_exit
      _
    %1039 = vsyncpa [#allocation5], 1
    %s1040 = scalar_lea.sflag [#allocation5], 1
    %1041 = vsyncpa %s1040, 1
    %1042 = vsyncpa [#allocation8], 1
    %s1043 = scalar_lea.sflag [#allocation8], 1
    %1044 = vsyncpa %s1043, 1
    %1045 = vsyncpa [#allocation6], 1
    %s1046 = scalar_lea.sflag [#allocation6], 1
    %1047 = vsyncpa %s1046, 1

</llo_original>
